<compile_context>
chip_gen: v6e
topology: v6e:2x2x1
jax: 0.10.0
libtpu: 0.0.40
codegen_flags: <defaults>
</compile_context>

<pallas_src>
import math

import jax
import jax.numpy as jnp
from jax import lax
from jax.experimental import pallas as pl
from jax.experimental.pallas import tpu as pltpu

NEG_SLOPE = 0.01  # nn.LeakyReLU default

_CompilerParams = getattr(pltpu, "CompilerParams", None)


def _leaky(v):
    return jnp.where(v > 0.0, v, NEG_SLOPE * v)


# ----------------------------- fused forward kernel --------------------------

def _make_fused_kernel(NB, Hp, Wp, H2, W2, C):
    """Fused forward for a block of NB images.

    In-kernel layouts (2-D: raster rows x channels-on-lanes):
      xw_ref : (16, NB*Hp*Wp, C)            first-pool windows, window-pos major
      pad1*  : (NB*(Hp+2)*(Wp+2), C)        zero-padded pooled maps (per-image planes)
      pad2*  : (NB*(H2+2)*(W2+2), 2C)
    Loops are Python-unrolled (tiny trip counts); switch to
    lax.fori_loop(..., unroll=True) if Hp*Wp grows large.
    """
    Wq1, PP1 = Wp + 2, (Hp + 2) * (Wp + 2)
    Wq2, PP2 = W2 + 2, (H2 + 2) * (W2 + 2)
    inv16 = 1.0 / 16.0

    def im2col_conv(pad_ref, w_ref, b_ref, Ho, Wo, PP, Wq):
        # Build the (NB*Ho*Wo, 9*Cin) tap matrix and do ONE MXU matmul.
        taps = []
        for t in range(9):
            dy, dx = t // 3, t % 3
            rows = []
            for b in range(NB):
                for y in range(Ho):
                    s = b * PP + (y + dy) * Wq + dx
                    rows.append(pad_ref[s:s + Wo, :])
            taps.append(rows[0] if len(rows) == 1 else jnp.concatenate(rows, axis=0))
        col = jnp.concatenate(taps, axis=1)                       # (M, 9*Cin)
        out = jnp.dot(col.astype(w_ref.dtype), w_ref[...],
                      preferred_element_type=jnp.float32) + b_ref[...]
        return _leaky(out)

    def pool4_to_pad(y1, pad_ref, use_max):
        # 4x4 / stride-4 pool of y1 (NB*Hp*Wp, Cc) -> interior of pad_ref.
        for b in range(NB):
            src_b = b * Hp * Wp
            dst_b = b * PP2
            for i2 in range(H2):
                chunks = []
                for j2 in range(W2):
                    acc = None
                    for dy in range(4):
                        s = src_b + (4 * i2 + dy) * Wp + 4 * j2
                        blk = y1[s:s + 4, :]
                        if acc is None:
                            acc = blk
                        else:
                            acc = jnp.maximum(acc, blk) if use_max else acc + blk
                    if use_max:
                        chunks.append(jnp.max(acc, axis=0, keepdims=True))
                    else:
                        chunks.append(jnp.sum(acc, axis=0, keepdims=True) * inv16)
                row = chunks[0] if W2 == 1 else jnp.concatenate(chunks, axis=0)
                dst = dst_b + (i2 + 1) * Wq2 + 1
                pad_ref[dst:dst + W2, :] = row

    def gap(y2):
        # (NB*H2*W2, Cc) -> (NB, Cc): spatial mean per image (AdaptiveAvgPool(1,1)).
        if H2 * W2 == 1:
            return y2
        outs = []
        for b in range(NB):
            s = b * H2 * W2
            outs.append(jnp.sum(y2[s:s + H2 * W2, :], axis=0, keepdims=True)
                        * (1.0 / (H2 * W2)))
        return outs[0] if NB == 1 else jnp.concatenate(outs, axis=0)

    def kernel(xw_ref, w1, b1, w2, b2, w3, b3, w4, b4, w5, b5, wo, bo,
               o_ref, pad1m, pad1a, pad2m, pad2a):
        # Zero the padded planes.  Interiors are fully rewritten below, but with
        # a "parallel" grid axis each TensorCore has its own scratch, so a
        # program_id==0 zero-once guard would be unsafe; these are 4 tiny dense
        # stores per step.
        pad1m[...] = jnp.zeros(pad1m.shape, pad1m.dtype)
        pad1a[...] = jnp.zeros(pad1a.shape, pad1a.dtype)
        pad2m[...] = jnp.zeros(pad2m.shape, pad2m.dtype)
        pad2a[...] = jnp.zeros(pad2a.shape, pad2a.dtype)

        # ---- first 4x4 pools: max & avg share the 16 dense window reads ----
        v = xw_ref[0]
        mp1, ap1 = v, v
        for t in range(1, 16):
            v = xw_ref[t]
            mp1 = jnp.maximum(mp1, v)
            ap1 = ap1 + v
        ap1 = ap1 * inv16

        # Scatter pooled interiors into the zero-padded planes.
        for b in range(NB):
            for y in range(Hp):
                src = b * Hp * Wp + y * Wp
                dst = b * PP1 + (y + 1) * Wq1 + 1
                pad1m[dst:dst + Wp, :] = mp1[src:src + Wp, :]
                pad1a[dst:dst + Wp, :] = ap1[src:src + Wp, :]

        # ---- conv1 / conv2 (single im2col matmul each) + LeakyReLU ----
        y1m = im2col_conv(pad1m, w1, b1, Hp, Wp, PP1, Wq1)        # (NB*Hp*Wp, 2C)
        y1a = im2col_conv(pad1a, w2, b2, Hp, Wp, PP1, Wq1)

        # ---- second 4x4 pools ----
        pool4_to_pad(y1m, pad2m, True)
        pool4_to_pad(y1a, pad2a, False)

        # ---- conv3 / conv4 + LeakyReLU ----
        y2m = im2col_conv(pad2m, w3, b3, H2, W2, PP2, Wq2)        # (NB*H2*W2, 4C)
        y2a = im2col_conv(pad2a, w4, b4, H2, W2, PP2, Wq2)

        # ---- GAP + 1x1 "dense" tail ----
        g1 = gap(y2m)                                             # (NB, 4C)
        g2 = gap(y2a)                                             # (NB, 4C)
        h = jnp.concatenate([g1, g2], axis=1)                     # (NB, 8C)
        h = _leaky(jnp.dot(h.astype(w5.dtype), w5[...],
                           preferred_element_type=jnp.float32) + b5[...])
        y = _leaky(jnp.dot(h.astype(wo.dtype), wo[...],
                           preferred_element_type=jnp.float32) + bo[...])
        o_ref[0] = y.astype(o_ref.dtype)

    return kernel


def _resident_spec(a):
    """Whole-array VMEM block with a grid-constant index map (stays resident)."""
    zeros = (0,) * a.ndim
    return pl.BlockSpec(a.shape, lambda g, z=zeros: z)


def classification_forward(x_nchw, p, use_bf16=False):
    x = jnp.transpose(x_nchw, (0, 2, 3, 1)).astype(jnp.float32)   # NCHW -> NHWC
    N, H, W, C = x.shape
    assert H >= 16 and W >= 16, "need >= 16x16 spatial for two 4x4 pools"
    classes = p["wo"].shape[-1]
    Hp, Wp = H // 4, W // 4        # after first 4x4 pool (floor)
    H2, W2 = Hp // 4, Wp // 4      # after second 4x4 pool (floor)

    # Batch-block size: fill the conv matmul M dimension (target NB*Hp*Wp>=128)
    # while keeping grid length >= 2 when N >= 2 (v7x megacore split).
    NB = max(1, min(8, (N + 1) // 2))
    if (NB * Hp * Wp) % 8 != 0:    # block sublane dim must be 8-aligned unless full
        NB = N
    G = (N + NB - 1) // NB
    N_pad = G * NB
    if N_pad != N:
        x = jnp.concatenate([x, jnp.zeros((N_pad - N, H, W, C), x.dtype)], axis=0)

    # Window-position-major layout for the first 4x4 pools (layout plumbing in
    # XLA; both in-kernel pool branches share these 16 dense reads).
    xs = x[:, :4 * Hp, :4 * Wp, :]
    x_win = xs.reshape(N_pad, Hp, 4, Wp, 4, C).transpose(2, 4, 0, 1, 3, 5)
    x_win = x_win.reshape(16, N_pad * Hp * Wp, C)

    # Conv weights flattened to (9*Cin, Cout); tap order (dy, dx), channels fastest.
    wdt = jnp.bfloat16 if use_bf16 else jnp.float32
    w1 = p["w1"].reshape(9 * C, 2 * C).astype(wdt)
    w2 = p["w2"].reshape(9 * C, 2 * C).astype(wdt)
    w3 = p["w3"].reshape(9 * 2 * C, 4 * C).astype(wdt)
    w4 = p["w4"].reshape(9 * 2 * C, 4 * C).astype(wdt)
    weights = (w1, p["b1"], w2, p["b2"], w3, p["b3"], w4, p["b4"],
               p["w5"].astype(wdt), p["b5"], p["wo"].astype(wdt), p["bo"])

    # Explicit VMEM budget (respect v7x's 64 MiB physical at larger shapes).
    blk_in = 16 * NB * Hp * Wp * C * 4
    w_bytes = sum(int(a.size) * a.dtype.itemsize for a in weights)
    scr = 4 * NB * ((Hp + 2) * (Wp + 2) * C + (H2 + 2) * (W2 + 2) * 2 * C)
    est = 2 * blk_in + 2 * w_bytes + scr + 2 * NB * classes * 4
    vmem_limit = int(min(64 * 2**20, max(32 * 2**20, 4 * est)))

    compiler_params = None
    if _CompilerParams is not None:
        compiler_params = _CompilerParams(dimension_semantics=("parallel",),
                                          vmem_limit_bytes=vmem_limit)

    out = pl.pallas_call(
        _make_fused_kernel(NB, Hp, Wp, H2, W2, C),
        out_shape=jax.ShapeDtypeStruct((G, NB, classes), jnp.float32),
        grid=(G,),
        in_specs=[pl.BlockSpec((16, NB * Hp * Wp, C), lambda g: (0, g, 0))]
                 + [_resident_spec(a) for a in weights],
        out_specs=pl.BlockSpec((1, NB, classes), lambda g: (g, 0, 0)),
        scratch_shapes=[
            pltpu.VMEM((NB * (Hp + 2) * (Wp + 2), C), jnp.float32),       # pad1m
            pltpu.VMEM((NB * (Hp + 2) * (Wp + 2), C), jnp.float32),       # pad1a
            pltpu.VMEM((NB * (H2 + 2) * (W2 + 2), 2 * C), jnp.float32),   # pad2m
            pltpu.VMEM((NB * (H2 + 2) * (W2 + 2), 2 * C), jnp.float32),   # pad2a
        ],
        compiler_params=compiler_params,
    )(x_win, *weights)

    out = out.reshape(N_pad, classes)[:N]
    return out.reshape(N, classes, 1, 1)                                  # (N, classes, 1, 1)


# ---------------------------- pure-JAX reference path ------------------------

def _ref_forward(x_nchw, p):
    x = jnp.transpose(x_nchw, (0, 2, 3, 1)).astype(jnp.float32)

    def mp(v):
        return lax.reduce_window(v, -jnp.inf, lax.max, (1, 4, 4, 1), (1, 4, 4, 1), "VALID")

    def ap(v):
        return lax.reduce_window(v, 0.0, lax.add, (1, 4, 4, 1), (1, 4, 4, 1), "VALID") / 16.0

    def conv(v, w, b):
        o = lax.conv_general_dilated(v, w, (1, 1), "SAME",
                                     dimension_numbers=("NHWC", "HWIO", "NHWC"))
        return _leaky(o + b.reshape(1, 1, 1, -1))

    x1 = conv(mp(x), p["w1"], p["b1"])
    x1 = conv(mp(x1), p["w3"], p["b3"])
    x1 = jnp.mean(x1, axis=(1, 2))
    x2 = conv(ap(x), p["w2"], p["b2"])
    x2 = conv(ap(x2), p["w4"], p["b4"])
    x2 = jnp.mean(x2, axis=(1, 2))
    h = jnp.concatenate([x1, x2], axis=1)
    h = _leaky(h @ p["w5"] + p["b5"])
    y = _leaky(h @ p["wo"] + p["bo"])
    return y.reshape(y.shape[0], -1, 1, 1)


# ------------------------------------ params ---------------------------------

def init_params(key, channels, classes):
    def conv_init(k, kh, kw, cin, cout):
        k1, k2 = jax.random.split(k)
        bound = 1.0 / math.sqrt(kh * kw * cin)
        w = jax.random.uniform(k1, (kh, kw, cin, cout), jnp.float32, -bound, bound)
        b = jax.random.uniform(k2, (1, cout), jnp.float32, -bound, bound)
        return w, b

    ks = jax.random.split(key, 6)
    C = channels
    p = {}
    p["w1"], p["b1"] = conv_init(ks[0], 3, 3, C, 2 * C)
    p["w2"], p["b2"] = conv_init(ks[1], 3, 3, C, 2 * C)
    p["w3"], p["b3"] = conv_init(ks[2], 3, 3, 2 * C, 4 * C)
    p["w4"], p["b4"] = conv_init(ks[3], 3, 3, 2 * C, 4 * C)
    w5, b5 = conv_init(ks[4], 1, 1, 8 * C, 8 * C)
    wo, bo = conv_init(ks[5], 1, 1, 8 * C, classes)
    p["w5"], p["b5"] = w5.reshape(8 * C, 8 * C), b5
    p["wo"], p["bo"] = wo.reshape(8 * C, classes), bo
    return p


# ------------------------------------- main -----------------------------------

if __name__ == "__main__":
    channels, classes = 4, 5
    N, H, W = 2, 16, 16

    key = jax.random.PRNGKey(0)
    kx, kp = jax.random.split(key)
    x = jax.random.normal(kx, (N, channels, H, W), jnp.float32)   # NCHW like PyTorch
    params = init_params(kp, channels, classes)

    fwd = jax.jit(lambda xx: classification_forward(xx, params))
    out = jax.block_until_ready(fwd(x))
    assert out.shape == (N, classes, 1, 1)

    ref = jax.block_until_ready(_ref_forward(x, params))
    err = float(jnp.max(jnp.abs(out - ref)))
    assert err < 1e-3, f"mismatch vs pure-JAX reference: {err}"

    print("KERNEL_OK")
</pallas_src>

<mosaic_0001>
module attributes {stable_mosaic.version = 11 : i64} {
  func.func @kernel(%arg0: i32, %arg1: memref<16x16x4xf32, #tpu.memory_space<vmem>>, %arg2: memref<36x8xf32, #tpu.memory_space<vmem>>, %arg3: memref<1x8xf32, #tpu.memory_space<vmem>>, %arg4: memref<36x8xf32, #tpu.memory_space<vmem>>, %arg5: memref<1x8xf32, #tpu.memory_space<vmem>>, %arg6: memref<72x16xf32, #tpu.memory_space<vmem>>, %arg7: memref<1x16xf32, #tpu.memory_space<vmem>>, %arg8: memref<72x16xf32, #tpu.memory_space<vmem>>, %arg9: memref<1x16xf32, #tpu.memory_space<vmem>>, %arg10: memref<32x32xf32, #tpu.memory_space<vmem>>, %arg11: memref<1x32xf32, #tpu.memory_space<vmem>>, %arg12: memref<32x5xf32, #tpu.memory_space<vmem>>, %arg13: memref<1x5xf32, #tpu.memory_space<vmem>>, %arg14: memref<1x1x5xf32, #tpu.memory_space<vmem>>, %arg15: memref<36x4xf32, #tpu.memory_space<vmem>>, %arg16: memref<36x4xf32, #tpu.memory_space<vmem>>, %arg17: memref<9x8xf32, #tpu.memory_space<vmem>>, %arg18: memref<9x8xf32, #tpu.memory_space<vmem>>) attributes {dimension_semantics = [#tpu.dimension_semantics<parallel>], iteration_bounds = array<i64: 2>, scalar_prefetch = 0 : i64, scratch_operands = 4 : i64, tpu.core_type = #tpu.core_type<tc>, window_params = [{transform_indices = @transform_0, window_bounds = array<i64: 16, 16, 4>}, {pipeline_mode = #tpu.pipeline_mode<synchronous>, transform_indices = @transform_1, window_bounds = array<i64: 36, 8>}, {pipeline_mode = #tpu.pipeline_mode<synchronous>, transform_indices = @transform_2, window_bounds = array<i64: 1, 8>}, {pipeline_mode = #tpu.pipeline_mode<synchronous>, transform_indices = @transform_3, window_bounds = array<i64: 36, 8>}, {pipeline_mode = #tpu.pipeline_mode<synchronous>, transform_indices = @transform_4, window_bounds = array<i64: 1, 8>}, {pipeline_mode = #tpu.pipeline_mode<synchronous>, transform_indices = @transform_5, window_bounds = array<i64: 72, 16>}, {pipeline_mode = #tpu.pipeline_mode<synchronous>, transform_indices = @transform_6, window_bounds = array<i64: 1, 16>}, {pipeline_mode = #tpu.pipeline_mode<synchronous>, transform_indices = @transform_7, window_bounds = array<i64: 72, 16>}, {pipeline_mode = #tpu.pipeline_mode<synchronous>, transform_indices = @transform_8, window_bounds = array<i64: 1, 16>}, {pipeline_mode = #tpu.pipeline_mode<synchronous>, transform_indices = @transform_9, window_bounds = array<i64: 32, 32>}, {pipeline_mode = #tpu.pipeline_mode<synchronous>, transform_indices = @transform_10, window_bounds = array<i64: 1, 32>}, {pipeline_mode = #tpu.pipeline_mode<synchronous>, transform_indices = @transform_11, window_bounds = array<i64: 32, 5>}, {pipeline_mode = #tpu.pipeline_mode<synchronous>, transform_indices = @transform_12, window_bounds = array<i64: 1, 5>}, {transform_indices = @transform_13, window_bounds = array<i64: 1, 1, 5>}]} {
    %cst = arith.constant 0.000000e+00 : f32
    %0 = vector.broadcast %cst : f32 to vector<36x4xf32>
    %c0 = arith.constant 0 : index
    %c0_0 = arith.constant 0 : index
    %1 = vector.load %arg15[%c0, %c0_0] : memref<36x4xf32, #tpu.memory_space<vmem>>, vector<36x4xf32>
    tpu.vector_store %arg15[%c0, %c0_0], %0 {strides = array<i32>} : memref<36x4xf32, #tpu.memory_space<vmem>>, vector<36x4xf32>,
    %cst_1 = arith.constant 0.000000e+00 : f32
    %2 = vector.broadcast %cst_1 : f32 to vector<36x4xf32>
    %c0_2 = arith.constant 0 : index
    %c0_3 = arith.constant 0 : index
    %3 = vector.load %arg16[%c0_2, %c0_3] : memref<36x4xf32, #tpu.memory_space<vmem>>, vector<36x4xf32>
    tpu.vector_store %arg16[%c0_2, %c0_3], %2 {strides = array<i32>} : memref<36x4xf32, #tpu.memory_space<vmem>>, vector<36x4xf32>,
    %cst_4 = arith.constant 0.000000e+00 : f32
    %4 = vector.broadcast %cst_4 : f32 to vector<9x8xf32>
    %c0_5 = arith.constant 0 : index
    %c0_6 = arith.constant 0 : index
    %5 = vector.load %arg17[%c0_5, %c0_6] : memref<9x8xf32, #tpu.memory_space<vmem>>, vector<9x8xf32>
    tpu.vector_store %arg17[%c0_5, %c0_6], %4 {strides = array<i32>} : memref<9x8xf32, #tpu.memory_space<vmem>>, vector<9x8xf32>,
    %cst_7 = arith.constant 0.000000e+00 : f32
    %6 = vector.broadcast %cst_7 : f32 to vector<9x8xf32>
    %c0_8 = arith.constant 0 : index
    %c0_9 = arith.constant 0 : index
    %7 = vector.load %arg18[%c0_8, %c0_9] : memref<9x8xf32, #tpu.memory_space<vmem>>, vector<9x8xf32>
    tpu.vector_store %arg18[%c0_8, %c0_9], %6 {strides = array<i32>} : memref<9x8xf32, #tpu.memory_space<vmem>>, vector<9x8xf32>,
    %c0_10 = arith.constant 0 : index
    %c0_11 = arith.constant 0 : index
    %c0_12 = arith.constant 0 : index
    %8 = vector.load %arg1[%c0_10, %c0_11, %c0_12] : memref<16x16x4xf32, #tpu.memory_space<vmem>>, vector<1x16x4xf32>
    %9 = vector.shape_cast %8 : vector<1x16x4xf32> to vector<16x4xf32>
    %c1 = arith.constant 1 : index
    %c0_13 = arith.constant 0 : index
    %c0_14 = arith.constant 0 : index
    %10 = vector.load %arg1[%c1, %c0_13, %c0_14] : memref<16x16x4xf32, #tpu.memory_space<vmem>>, vector<1x16x4xf32>
    %11 = vector.shape_cast %10 : vector<1x16x4xf32> to vector<16x4xf32>
    %12 = arith.maximumf %9, %11 : vector<16x4xf32>
    %13 = arith.addf %9, %11 : vector<16x4xf32>
    %c2 = arith.constant 2 : index
    %c0_15 = arith.constant 0 : index
    %c0_16 = arith.constant 0 : index
    %14 = vector.load %arg1[%c2, %c0_15, %c0_16] : memref<16x16x4xf32, #tpu.memory_space<vmem>>, vector<1x16x4xf32>
    %15 = vector.shape_cast %14 : vector<1x16x4xf32> to vector<16x4xf32>
    %16 = arith.maximumf %12, %15 : vector<16x4xf32>
    %17 = arith.addf %13, %15 : vector<16x4xf32>
    %c3 = arith.constant 3 : index
    %c0_17 = arith.constant 0 : index
    %c0_18 = arith.constant 0 : index
    %18 = vector.load %arg1[%c3, %c0_17, %c0_18] : memref<16x16x4xf32, #tpu.memory_space<vmem>>, vector<1x16x4xf32>
    %19 = vector.shape_cast %18 : vector<1x16x4xf32> to vector<16x4xf32>
    %20 = arith.maximumf %16, %19 : vector<16x4xf32>
    %21 = arith.addf %17, %19 : vector<16x4xf32>
    %c4 = arith.constant 4 : index
    %c0_19 = arith.constant 0 : index
    %c0_20 = arith.constant 0 : index
    %22 = vector.load %arg1[%c4, %c0_19, %c0_20] : memref<16x16x4xf32, #tpu.memory_space<vmem>>, vector<1x16x4xf32>
    %23 = vector.shape_cast %22 : vector<1x16x4xf32> to vector<16x4xf32>
    %24 = arith.maximumf %20, %23 : vector<16x4xf32>
    %25 = arith.addf %21, %23 : vector<16x4xf32>
    %c5 = arith.constant 5 : index
    %c0_21 = arith.constant 0 : index
    %c0_22 = arith.constant 0 : index
    %26 = vector.load %arg1[%c5, %c0_21, %c0_22] : memref<16x16x4xf32, #tpu.memory_space<vmem>>, vector<1x16x4xf32>
    %27 = vector.shape_cast %26 : vector<1x16x4xf32> to vector<16x4xf32>
    %28 = arith.maximumf %24, %27 : vector<16x4xf32>
    %29 = arith.addf %25, %27 : vector<16x4xf32>
    %c6 = arith.constant 6 : index
    %c0_23 = arith.constant 0 : index
    %c0_24 = arith.constant 0 : index
    %30 = vector.load %arg1[%c6, %c0_23, %c0_24] : memref<16x16x4xf32, #tpu.memory_space<vmem>>, vector<1x16x4xf32>
    %31 = vector.shape_cast %30 : vector<1x16x4xf32> to vector<16x4xf32>
    %32 = arith.maximumf %28, %31 : vector<16x4xf32>
    %33 = arith.addf %29, %31 : vector<16x4xf32>
    %c7 = arith.constant 7 : index
    %c0_25 = arith.constant 0 : index
    %c0_26 = arith.constant 0 : index
    %34 = vector.load %arg1[%c7, %c0_25, %c0_26] : memref<16x16x4xf32, #tpu.memory_space<vmem>>, vector<1x16x4xf32>
    %35 = vector.shape_cast %34 : vector<1x16x4xf32> to vector<16x4xf32>
    %36 = arith.maximumf %32, %35 : vector<16x4xf32>
    %37 = arith.addf %33, %35 : vector<16x4xf32>
    %c8 = arith.constant 8 : index
    %c0_27 = arith.constant 0 : index
    %c0_28 = arith.constant 0 : index
    %38 = vector.load %arg1[%c8, %c0_27, %c0_28] : memref<16x16x4xf32, #tpu.memory_space<vmem>>, vector<1x16x4xf32>
    %39 = vector.shape_cast %38 : vector<1x16x4xf32> to vector<16x4xf32>
    %40 = arith.maximumf %36, %39 : vector<16x4xf32>
    %41 = arith.addf %37, %39 : vector<16x4xf32>
    %c9 = arith.constant 9 : index
    %c0_29 = arith.constant 0 : index
    %c0_30 = arith.constant 0 : index
    %42 = vector.load %arg1[%c9, %c0_29, %c0_30] : memref<16x16x4xf32, #tpu.memory_space<vmem>>, vector<1x16x4xf32>
    %43 = vector.shape_cast %42 : vector<1x16x4xf32> to vector<16x4xf32>
    %44 = arith.maximumf %40, %43 : vector<16x4xf32>
    %45 = arith.addf %41, %43 : vector<16x4xf32>
    %c10 = arith.constant 10 : index
    %c0_31 = arith.constant 0 : index
    %c0_32 = arith.constant 0 : index
    %46 = vector.load %arg1[%c10, %c0_31, %c0_32] : memref<16x16x4xf32, #tpu.memory_space<vmem>>, vector<1x16x4xf32>
    %47 = vector.shape_cast %46 : vector<1x16x4xf32> to vector<16x4xf32>
    %48 = arith.maximumf %44, %47 : vector<16x4xf32>
    %49 = arith.addf %45, %47 : vector<16x4xf32>
    %c11 = arith.constant 11 : index
    %c0_33 = arith.constant 0 : index
    %c0_34 = arith.constant 0 : index
    %50 = vector.load %arg1[%c11, %c0_33, %c0_34] : memref<16x16x4xf32, #tpu.memory_space<vmem>>, vector<1x16x4xf32>
    %51 = vector.shape_cast %50 : vector<1x16x4xf32> to vector<16x4xf32>
    %52 = arith.maximumf %48, %51 : vector<16x4xf32>
    %53 = arith.addf %49, %51 : vector<16x4xf32>
    %c12 = arith.constant 12 : index
    %c0_35 = arith.constant 0 : index
    %c0_36 = arith.constant 0 : index
    %54 = vector.load %arg1[%c12, %c0_35, %c0_36] : memref<16x16x4xf32, #tpu.memory_space<vmem>>, vector<1x16x4xf32>
    %55 = vector.shape_cast %54 : vector<1x16x4xf32> to vector<16x4xf32>
    %56 = arith.maximumf %52, %55 : vector<16x4xf32>
    %57 = arith.addf %53, %55 : vector<16x4xf32>
    %c13 = arith.constant 13 : index
    %c0_37 = arith.constant 0 : index
    %c0_38 = arith.constant 0 : index
    %58 = vector.load %arg1[%c13, %c0_37, %c0_38] : memref<16x16x4xf32, #tpu.memory_space<vmem>>, vector<1x16x4xf32>
    %59 = vector.shape_cast %58 : vector<1x16x4xf32> to vector<16x4xf32>
    %60 = arith.maximumf %56, %59 : vector<16x4xf32>
    %61 = arith.addf %57, %59 : vector<16x4xf32>
    %c14 = arith.constant 14 : index
    %c0_39 = arith.constant 0 : index
    %c0_40 = arith.constant 0 : index
    %62 = vector.load %arg1[%c14, %c0_39, %c0_40] : memref<16x16x4xf32, #tpu.memory_space<vmem>>, vector<1x16x4xf32>
    %63 = vector.shape_cast %62 : vector<1x16x4xf32> to vector<16x4xf32>
    %64 = arith.maximumf %60, %63 : vector<16x4xf32>
    %65 = arith.addf %61, %63 : vector<16x4xf32>
    %c15 = arith.constant 15 : index
    %c0_41 = arith.constant 0 : index
    %c0_42 = arith.constant 0 : index
    %66 = vector.load %arg1[%c15, %c0_41, %c0_42] : memref<16x16x4xf32, #tpu.memory_space<vmem>>, vector<1x16x4xf32>
    %67 = vector.shape_cast %66 : vector<1x16x4xf32> to vector<16x4xf32>
    %68 = arith.maximumf %64, %67 : vector<16x4xf32>
    %69 = arith.addf %65, %67 : vector<16x4xf32>
    %cst_43 = arith.constant 6.250000e-02 : f32
    %70 = vector.broadcast %cst_43 : f32 to vector<16x4xf32>
    %71 = arith.mulf %69, %70 : vector<16x4xf32>
    %72 = vector.extract_strided_slice %68 {offsets = [0, 0], sizes = [4, 4], strides = [1, 1]} : vector<16x4xf32> to vector<4x4xf32>
    %c7_44 = arith.constant 7 : index
    %c0_45 = arith.constant 0 : index
    %73 = vector.load %arg15[%c7_44, %c0_45] : memref<36x4xf32, #tpu.memory_space<vmem>>, vector<4x4xf32>
    tpu.vector_store %arg15[%c7_44, %c0_45], %72 {strides = array<i32>} : memref<36x4xf32, #tpu.memory_space<vmem>>, vector<4x4xf32>,
    %74 = vector.extract_strided_slice %71 {offsets = [0, 0], sizes = [4, 4], strides = [1, 1]} : vector<16x4xf32> to vector<4x4xf32>
    %c7_46 = arith.constant 7 : index
    %c0_47 = arith.constant 0 : index
    %75 = vector.load %arg16[%c7_46, %c0_47] : memref<36x4xf32, #tpu.memory_space<vmem>>, vector<4x4xf32>
    tpu.vector_store %arg16[%c7_46, %c0_47], %74 {strides = array<i32>} : memref<36x4xf32, #tpu.memory_space<vmem>>, vector<4x4xf32>,
    %76 = vector.extract_strided_slice %68 {offsets = [4, 0], sizes = [4, 4], strides = [1, 1]} : vector<16x4xf32> to vector<4x4xf32>
    %c13_48 = arith.constant 13 : index
    %c0_49 = arith.constant 0 : index
    %77 = vector.load %arg15[%c13_48, %c0_49] : memref<36x4xf32, #tpu.memory_space<vmem>>, vector<4x4xf32>
    tpu.vector_store %arg15[%c13_48, %c0_49], %76 {strides = array<i32>} : memref<36x4xf32, #tpu.memory_space<vmem>>, vector<4x4xf32>,
    %78 = vector.extract_strided_slice %71 {offsets = [4, 0], sizes = [4, 4], strides = [1, 1]} : vector<16x4xf32> to vector<4x4xf32>
    %c13_50 = arith.constant 13 : index
    %c0_51 = arith.constant 0 : index
    %79 = vector.load %arg16[%c13_50, %c0_51] : memref<36x4xf32, #tpu.memory_space<vmem>>, vector<4x4xf32>
    tpu.vector_store %arg16[%c13_50, %c0_51], %78 {strides = array<i32>} : memref<36x4xf32, #tpu.memory_space<vmem>>, vector<4x4xf32>,
    %80 = vector.extract_strided_slice %68 {offsets = [8, 0], sizes = [4, 4], strides = [1, 1]} : vector<16x4xf32> to vector<4x4xf32>
    %c19 = arith.constant 19 : index
    %c0_52 = arith.constant 0 : index
    %81 = vector.load %arg15[%c19, %c0_52] : memref<36x4xf32, #tpu.memory_space<vmem>>, vector<4x4xf32>
    tpu.vector_store %arg15[%c19, %c0_52], %80 {strides = array<i32>} : memref<36x4xf32, #tpu.memory_space<vmem>>, vector<4x4xf32>,
    %82 = vector.extract_strided_slice %71 {offsets = [8, 0], sizes = [4, 4], strides = [1, 1]} : vector<16x4xf32> to vector<4x4xf32>
    %c19_53 = arith.constant 19 : index
    %c0_54 = arith.constant 0 : index
    %83 = vector.load %arg16[%c19_53, %c0_54] : memref<36x4xf32, #tpu.memory_space<vmem>>, vector<4x4xf32>
    tpu.vector_store %arg16[%c19_53, %c0_54], %82 {strides = array<i32>} : memref<36x4xf32, #tpu.memory_space<vmem>>, vector<4x4xf32>,
    %84 = vector.extract_strided_slice %68 {offsets = [12, 0], sizes = [4, 4], strides = [1, 1]} : vector<16x4xf32> to vector<4x4xf32>
    %c25 = arith.constant 25 : index
    %c0_55 = arith.constant 0 : index
    %85 = vector.load %arg15[%c25, %c0_55] : memref<36x4xf32, #tpu.memory_space<vmem>>, vector<4x4xf32>
    tpu.vector_store %arg15[%c25, %c0_55], %84 {strides = array<i32>} : memref<36x4xf32, #tpu.memory_space<vmem>>, vector<4x4xf32>,
    %86 = vector.extract_strided_slice %71 {offsets = [12, 0], sizes = [4, 4], strides = [1, 1]} : vector<16x4xf32> to vector<4x4xf32>
    %c25_56 = arith.constant 25 : index
    %c0_57 = arith.constant 0 : index
    %87 = vector.load %arg16[%c25_56, %c0_57] : memref<36x4xf32, #tpu.memory_space<vmem>>, vector<4x4xf32>
    tpu.vector_store %arg16[%c25_56, %c0_57], %86 {strides = array<i32>} : memref<36x4xf32, #tpu.memory_space<vmem>>, vector<4x4xf32>,
    %c0_58 = arith.constant 0 : index
    %c0_59 = arith.constant 0 : index
    %88 = vector.load %arg15[%c0_58, %c0_59] : memref<36x4xf32, #tpu.memory_space<vmem>>, vector<4x4xf32>
    %c6_60 = arith.constant 6 : index
    %c0_61 = arith.constant 0 : index
    %89 = vector.load %arg15[%c6_60, %c0_61] : memref<36x4xf32, #tpu.memory_space<vmem>>, vector<4x4xf32>
    %c12_62 = arith.constant 12 : index
    %c0_63 = arith.constant 0 : index
    %90 = vector.load %arg15[%c12_62, %c0_63] : memref<36x4xf32, #tpu.memory_space<vmem>>, vector<4x4xf32>
    %c18 = arith.constant 18 : index
    %c0_64 = arith.constant 0 : index
    %91 = vector.load %arg15[%c18, %c0_64] : memref<36x4xf32, #tpu.memory_space<vmem>>, vector<4x4xf32>
    %92 = tpu.concatenate %88, %89, %90, %91 in 0 : vector<4x4xf32>, vector<4x4xf32>, vector<4x4xf32>, vector<4x4xf32> -> vector<16x4xf32>
    %c1_65 = arith.constant 1 : index
    %c0_66 = arith.constant 0 : index
    %93 = vector.load %arg15[%c1_65, %c0_66] : memref<36x4xf32, #tpu.memory_space<vmem>>, vector<4x4xf32>
    %c7_67 = arith.constant 7 : index
    %c0_68 = arith.constant 0 : index
    %94 = vector.load %arg15[%c7_67, %c0_68] : memref<36x4xf32, #tpu.memory_space<vmem>>, vector<4x4xf32>
    %c13_69 = arith.constant 13 : index
    %c0_70 = arith.constant 0 : index
    %95 = vector.load %arg15[%c13_69, %c0_70] : memref<36x4xf32, #tpu.memory_space<vmem>>, vector<4x4xf32>
    %c19_71 = arith.constant 19 : index
    %c0_72 = arith.constant 0 : index
    %96 = vector.load %arg15[%c19_71, %c0_72] : memref<36x4xf32, #tpu.memory_space<vmem>>, vector<4x4xf32>
    %97 = tpu.concatenate %93, %94, %95, %96 in 0 : vector<4x4xf32>, vector<4x4xf32>, vector<4x4xf32>, vector<4x4xf32> -> vector<16x4xf32>
    %c2_73 = arith.constant 2 : index
    %c0_74 = arith.constant 0 : index
    %98 = vector.load %arg15[%c2_73, %c0_74] : memref<36x4xf32, #tpu.memory_space<vmem>>, vector<4x4xf32>
    %c8_75 = arith.constant 8 : index
    %c0_76 = arith.constant 0 : index
    %99 = vector.load %arg15[%c8_75, %c0_76] : memref<36x4xf32, #tpu.memory_space<vmem>>, vector<4x4xf32>
    %c14_77 = arith.constant 14 : index
    %c0_78 = arith.constant 0 : index
    %100 = vector.load %arg15[%c14_77, %c0_78] : memref<36x4xf32, #tpu.memory_space<vmem>>, vector<4x4xf32>
    %c20 = arith.constant 20 : index
    %c0_79 = arith.constant 0 : index
    %101 = vector.load %arg15[%c20, %c0_79] : memref<36x4xf32, #tpu.memory_space<vmem>>, vector<4x4xf32>
    %102 = tpu.concatenate %98, %99, %100, %101 in 0 : vector<4x4xf32>, vector<4x4xf32>, vector<4x4xf32>, vector<4x4xf32> -> vector<16x4xf32>
    %c6_80 = arith.constant 6 : index
    %c0_81 = arith.constant 0 : index
    %103 = vector.load %arg15[%c6_80, %c0_81] : memref<36x4xf32, #tpu.memory_space<vmem>>, vector<4x4xf32>
    %c12_82 = arith.constant 12 : index
    %c0_83 = arith.constant 0 : index
    %104 = vector.load %arg15[%c12_82, %c0_83] : memref<36x4xf32, #tpu.memory_space<vmem>>, vector<4x4xf32>
    %c18_84 = arith.constant 18 : index
    %c0_85 = arith.constant 0 : index
    %105 = vector.load %arg15[%c18_84, %c0_85] : memref<36x4xf32, #tpu.memory_space<vmem>>, vector<4x4xf32>
    %c24 = arith.constant 24 : index
    %c0_86 = arith.constant 0 : index
    %106 = vector.load %arg15[%c24, %c0_86] : memref<36x4xf32, #tpu.memory_space<vmem>>, vector<4x4xf32>
    %107 = tpu.concatenate %103, %104, %105, %106 in 0 : vector<4x4xf32>, vector<4x4xf32>, vector<4x4xf32>, vector<4x4xf32> -> vector<16x4xf32>
    %c7_87 = arith.constant 7 : index
    %c0_88 = arith.constant 0 : index
    %108 = vector.load %arg15[%c7_87, %c0_88] : memref<36x4xf32, #tpu.memory_space<vmem>>, vector<4x4xf32>
    %c13_89 = arith.constant 13 : index
    %c0_90 = arith.constant 0 : index
    %109 = vector.load %arg15[%c13_89, %c0_90] : memref<36x4xf32, #tpu.memory_space<vmem>>, vector<4x4xf32>
    %c19_91 = arith.constant 19 : index
    %c0_92 = arith.constant 0 : index
    %110 = vector.load %arg15[%c19_91, %c0_92] : memref<36x4xf32, #tpu.memory_space<vmem>>, vector<4x4xf32>
    %c25_93 = arith.constant 25 : index
    %c0_94 = arith.constant 0 : index
    %111 = vector.load %arg15[%c25_93, %c0_94] : memref<36x4xf32, #tpu.memory_space<vmem>>, vector<4x4xf32>
    %112 = tpu.concatenate %108, %109, %110, %111 in 0 : vector<4x4xf32>, vector<4x4xf32>, vector<4x4xf32>, vector<4x4xf32> -> vector<16x4xf32>
    %c8_95 = arith.constant 8 : index
    %c0_96 = arith.constant 0 : index
    %113 = vector.load %arg15[%c8_95, %c0_96] : memref<36x4xf32, #tpu.memory_space<vmem>>, vector<4x4xf32>
    %c14_97 = arith.constant 14 : index
    %c0_98 = arith.constant 0 : index
    %114 = vector.load %arg15[%c14_97, %c0_98] : memref<36x4xf32, #tpu.memory_space<vmem>>, vector<4x4xf32>
    %c20_99 = arith.constant 20 : index
    %c0_100 = arith.constant 0 : index
    %115 = vector.load %arg15[%c20_99, %c0_100] : memref<36x4xf32, #tpu.memory_space<vmem>>, vector<4x4xf32>
    %c26 = arith.constant 26 : index
    %c0_101 = arith.constant 0 : index
    %116 = vector.load %arg15[%c26, %c0_101] : memref<36x4xf32, #tpu.memory_space<vmem>>, vector<4x4xf32>
    %117 = tpu.concatenate %113, %114, %115, %116 in 0 : vector<4x4xf32>, vector<4x4xf32>, vector<4x4xf32>, vector<4x4xf32> -> vector<16x4xf32>
    %c12_102 = arith.constant 12 : index
    %c0_103 = arith.constant 0 : index
    %118 = vector.load %arg15[%c12_102, %c0_103] : memref<36x4xf32, #tpu.memory_space<vmem>>, vector<4x4xf32>
    %c18_104 = arith.constant 18 : index
    %c0_105 = arith.constant 0 : index
    %119 = vector.load %arg15[%c18_104, %c0_105] : memref<36x4xf32, #tpu.memory_space<vmem>>, vector<4x4xf32>
    %c24_106 = arith.constant 24 : index
    %c0_107 = arith.constant 0 : index
    %120 = vector.load %arg15[%c24_106, %c0_107] : memref<36x4xf32, #tpu.memory_space<vmem>>, vector<4x4xf32>
    %c30 = arith.constant 30 : index
    %c0_108 = arith.constant 0 : index
    %121 = vector.load %arg15[%c30, %c0_108] : memref<36x4xf32, #tpu.memory_space<vmem>>, vector<4x4xf32>
    %122 = tpu.concatenate %118, %119, %120, %121 in 0 : vector<4x4xf32>, vector<4x4xf32>, vector<4x4xf32>, vector<4x4xf32> -> vector<16x4xf32>
    %c13_109 = arith.constant 13 : index
    %c0_110 = arith.constant 0 : index
    %123 = vector.load %arg15[%c13_109, %c0_110] : memref<36x4xf32, #tpu.memory_space<vmem>>, vector<4x4xf32>
    %c19_111 = arith.constant 19 : index
    %c0_112 = arith.constant 0 : index
    %124 = vector.load %arg15[%c19_111, %c0_112] : memref<36x4xf32, #tpu.memory_space<vmem>>, vector<4x4xf32>
    %c25_113 = arith.constant 25 : index
    %c0_114 = arith.constant 0 : index
    %125 = vector.load %arg15[%c25_113, %c0_114] : memref<36x4xf32, #tpu.memory_space<vmem>>, vector<4x4xf32>
    %c31 = arith.constant 31 : index
    %c0_115 = arith.constant 0 : index
    %126 = vector.load %arg15[%c31, %c0_115] : memref<36x4xf32, #tpu.memory_space<vmem>>, vector<4x4xf32>
    %127 = tpu.concatenate %123, %124, %125, %126 in 0 : vector<4x4xf32>, vector<4x4xf32>, vector<4x4xf32>, vector<4x4xf32> -> vector<16x4xf32>
    %c14_116 = arith.constant 14 : index
    %c0_117 = arith.constant 0 : index
    %128 = vector.load %arg15[%c14_116, %c0_117] : memref<36x4xf32, #tpu.memory_space<vmem>>, vector<4x4xf32>
    %c20_118 = arith.constant 20 : index
    %c0_119 = arith.constant 0 : index
    %129 = vector.load %arg15[%c20_118, %c0_119] : memref<36x4xf32, #tpu.memory_space<vmem>>, vector<4x4xf32>
    %c26_120 = arith.constant 26 : index
    %c0_121 = arith.constant 0 : index
    %130 = vector.load %arg15[%c26_120, %c0_121] : memref<36x4xf32, #tpu.memory_space<vmem>>, vector<4x4xf32>
    %c32 = arith.constant 32 : index
    %c0_122 = arith.constant 0 : index
    %131 = vector.load %arg15[%c32, %c0_122] : memref<36x4xf32, #tpu.memory_space<vmem>>, vector<4x4xf32>
    %132 = tpu.concatenate %128, %129, %130, %131 in 0 : vector<4x4xf32>, vector<4x4xf32>, vector<4x4xf32>, vector<4x4xf32> -> vector<16x4xf32>
    %133 = tpu.concatenate %92, %97, %102, %107, %112, %117, %122, %127, %132 in 1 : vector<16x4xf32>, vector<16x4xf32>, vector<16x4xf32>, vector<16x4xf32>, vector<16x4xf32>, vector<16x4xf32>, vector<16x4xf32>, vector<16x4xf32>, vector<16x4xf32> -> vector<16x36xf32>
    %c0_123 = arith.constant 0 : index
    %c0_124 = arith.constant 0 : index
    %134 = vector.load %arg2[%c0_123, %c0_124] : memref<36x8xf32, #tpu.memory_space<vmem>>, vector<36x8xf32>
    %cst_125 = arith.constant dense<0.000000e+00> : vector<16x8xf32>
    %135 = tpu.matmul %133, %134, %cst_125 {dimension_numbers = #tpu.dot_dimension_numbers<[1], [0], [0], [1], [0, 0, 1, 1], [], []>} : vector<16x36xf32>, vector<36x8xf32>, vector<16x8xf32> -> vector<16x8xf32>
    %c0_126 = arith.constant 0 : index
    %c0_127 = arith.constant 0 : index
    %136 = vector.load %arg3[%c0_126, %c0_127] : memref<1x8xf32, #tpu.memory_space<vmem>>, vector<1x8xf32>
    %137 = vector.broadcast %136 : vector<1x8xf32> to vector<16x8xf32>
    %138 = arith.addf %135, %137 : vector<16x8xf32>
    %cst_128 = arith.constant 0.000000e+00 : f32
    %139 = vector.broadcast %cst_128 : f32 to vector<16x8xf32>
    %140 = arith.cmpf ogt, %138, %139 : vector<16x8xf32>
    %cst_129 = arith.constant 0.00999999977 : f32
    %141 = vector.broadcast %cst_129 : f32 to vector<16x8xf32>
    %142 = arith.mulf %141, %138 : vector<16x8xf32>
    %143 = arith.select %140, %138, %142 : vector<16x8xi1>, vector<16x8xf32>
    %c0_130 = arith.constant 0 : index
    %c0_131 = arith.constant 0 : index
    %144 = vector.load %arg16[%c0_130, %c0_131] : memref<36x4xf32, #tpu.memory_space<vmem>>, vector<4x4xf32>
    %c6_132 = arith.constant 6 : index
    %c0_133 = arith.constant 0 : index
    %145 = vector.load %arg16[%c6_132, %c0_133] : memref<36x4xf32, #tpu.memory_space<vmem>>, vector<4x4xf32>
    %c12_134 = arith.constant 12 : index
    %c0_135 = arith.constant 0 : index
    %146 = vector.load %arg16[%c12_134, %c0_135] : memref<36x4xf32, #tpu.memory_space<vmem>>, vector<4x4xf32>
    %c18_136 = arith.constant 18 : index
    %c0_137 = arith.constant 0 : index
    %147 = vector.load %arg16[%c18_136, %c0_137] : memref<36x4xf32, #tpu.memory_space<vmem>>, vector<4x4xf32>
    %148 = tpu.concatenate %144, %145, %146, %147 in 0 : vector<4x4xf32>, vector<4x4xf32>, vector<4x4xf32>, vector<4x4xf32> -> vector<16x4xf32>
    %c1_138 = arith.constant 1 : index
    %c0_139 = arith.constant 0 : index
    %149 = vector.load %arg16[%c1_138, %c0_139] : memref<36x4xf32, #tpu.memory_space<vmem>>, vector<4x4xf32>
    %c7_140 = arith.constant 7 : index
    %c0_141 = arith.constant 0 : index
    %150 = vector.load %arg16[%c7_140, %c0_141] : memref<36x4xf32, #tpu.memory_space<vmem>>, vector<4x4xf32>
    %c13_142 = arith.constant 13 : index
    %c0_143 = arith.constant 0 : index
    %151 = vector.load %arg16[%c13_142, %c0_143] : memref<36x4xf32, #tpu.memory_space<vmem>>, vector<4x4xf32>
    %c19_144 = arith.constant 19 : index
    %c0_145 = arith.constant 0 : index
    %152 = vector.load %arg16[%c19_144, %c0_145] : memref<36x4xf32, #tpu.memory_space<vmem>>, vector<4x4xf32>
    %153 = tpu.concatenate %149, %150, %151, %152 in 0 : vector<4x4xf32>, vector<4x4xf32>, vector<4x4xf32>, vector<4x4xf32> -> vector<16x4xf32>
    %c2_146 = arith.constant 2 : index
    %c0_147 = arith.constant 0 : index
    %154 = vector.load %arg16[%c2_146, %c0_147] : memref<36x4xf32, #tpu.memory_space<vmem>>, vector<4x4xf32>
    %c8_148 = arith.constant 8 : index
    %c0_149 = arith.constant 0 : index
    %155 = vector.load %arg16[%c8_148, %c0_149] : memref<36x4xf32, #tpu.memory_space<vmem>>, vector<4x4xf32>
    %c14_150 = arith.constant 14 : index
    %c0_151 = arith.constant 0 : index
    %156 = vector.load %arg16[%c14_150, %c0_151] : memref<36x4xf32, #tpu.memory_space<vmem>>, vector<4x4xf32>
    %c20_152 = arith.constant 20 : index
    %c0_153 = arith.constant 0 : index
    %157 = vector.load %arg16[%c20_152, %c0_153] : memref<36x4xf32, #tpu.memory_space<vmem>>, vector<4x4xf32>
    %158 = tpu.concatenate %154, %155, %156, %157 in 0 : vector<4x4xf32>, vector<4x4xf32>, vector<4x4xf32>, vector<4x4xf32> -> vector<16x4xf32>
    %c6_154 = arith.constant 6 : index
    %c0_155 = arith.constant 0 : index
    %159 = vector.load %arg16[%c6_154, %c0_155] : memref<36x4xf32, #tpu.memory_space<vmem>>, vector<4x4xf32>
    %c12_156 = arith.constant 12 : index
    %c0_157 = arith.constant 0 : index
    %160 = vector.load %arg16[%c12_156, %c0_157] : memref<36x4xf32, #tpu.memory_space<vmem>>, vector<4x4xf32>
    %c18_158 = arith.constant 18 : index
    %c0_159 = arith.constant 0 : index
    %161 = vector.load %arg16[%c18_158, %c0_159] : memref<36x4xf32, #tpu.memory_space<vmem>>, vector<4x4xf32>
    %c24_160 = arith.constant 24 : index
    %c0_161 = arith.constant 0 : index
    %162 = vector.load %arg16[%c24_160, %c0_161] : memref<36x4xf32, #tpu.memory_space<vmem>>, vector<4x4xf32>
    %163 = tpu.concatenate %159, %160, %161, %162 in 0 : vector<4x4xf32>, vector<4x4xf32>, vector<4x4xf32>, vector<4x4xf32> -> vector<16x4xf32>
    %c7_162 = arith.constant 7 : index
    %c0_163 = arith.constant 0 : index
    %164 = vector.load %arg16[%c7_162, %c0_163] : memref<36x4xf32, #tpu.memory_space<vmem>>, vector<4x4xf32>
    %c13_164 = arith.constant 13 : index
    %c0_165 = arith.constant 0 : index
    %165 = vector.load %arg16[%c13_164, %c0_165] : memref<36x4xf32, #tpu.memory_space<vmem>>, vector<4x4xf32>
    %c19_166 = arith.constant 19 : index
    %c0_167 = arith.constant 0 : index
    %166 = vector.load %arg16[%c19_166, %c0_167] : memref<36x4xf32, #tpu.memory_space<vmem>>, vector<4x4xf32>
    %c25_168 = arith.constant 25 : index
    %c0_169 = arith.constant 0 : index
    %167 = vector.load %arg16[%c25_168, %c0_169] : memref<36x4xf32, #tpu.memory_space<vmem>>, vector<4x4xf32>
    %168 = tpu.concatenate %164, %165, %166, %167 in 0 : vector<4x4xf32>, vector<4x4xf32>, vector<4x4xf32>, vector<4x4xf32> -> vector<16x4xf32>
    %c8_170 = arith.constant 8 : index
    %c0_171 = arith.constant 0 : index
    %169 = vector.load %arg16[%c8_170, %c0_171] : memref<36x4xf32, #tpu.memory_space<vmem>>, vector<4x4xf32>
    %c14_172 = arith.constant 14 : index
    %c0_173 = arith.constant 0 : index
    %170 = vector.load %arg16[%c14_172, %c0_173] : memref<36x4xf32, #tpu.memory_space<vmem>>, vector<4x4xf32>
    %c20_174 = arith.constant 20 : index
    %c0_175 = arith.constant 0 : index
    %171 = vector.load %arg16[%c20_174, %c0_175] : memref<36x4xf32, #tpu.memory_space<vmem>>, vector<4x4xf32>
    %c26_176 = arith.constant 26 : index
    %c0_177 = arith.constant 0 : index
    %172 = vector.load %arg16[%c26_176, %c0_177] : memref<36x4xf32, #tpu.memory_space<vmem>>, vector<4x4xf32>
    %173 = tpu.concatenate %169, %170, %171, %172 in 0 : vector<4x4xf32>, vector<4x4xf32>, vector<4x4xf32>, vector<4x4xf32> -> vector<16x4xf32>
    %c12_178 = arith.constant 12 : index
    %c0_179 = arith.constant 0 : index
    %174 = vector.load %arg16[%c12_178, %c0_179] : memref<36x4xf32, #tpu.memory_space<vmem>>, vector<4x4xf32>
    %c18_180 = arith.constant 18 : index
    %c0_181 = arith.constant 0 : index
    %175 = vector.load %arg16[%c18_180, %c0_181] : memref<36x4xf32, #tpu.memory_space<vmem>>, vector<4x4xf32>
    %c24_182 = arith.constant 24 : index
    %c0_183 = arith.constant 0 : index
    %176 = vector.load %arg16[%c24_182, %c0_183] : memref<36x4xf32, #tpu.memory_space<vmem>>, vector<4x4xf32>
    %c30_184 = arith.constant 30 : index
    %c0_185 = arith.constant 0 : index
    %177 = vector.load %arg16[%c30_184, %c0_185] : memref<36x4xf32, #tpu.memory_space<vmem>>, vector<4x4xf32>
    %178 = tpu.concatenate %174, %175, %176, %177 in 0 : vector<4x4xf32>, vector<4x4xf32>, vector<4x4xf32>, vector<4x4xf32> -> vector<16x4xf32>
    %c13_186 = arith.constant 13 : index
    %c0_187 = arith.constant 0 : index
    %179 = vector.load %arg16[%c13_186, %c0_187] : memref<36x4xf32, #tpu.memory_space<vmem>>, vector<4x4xf32>
    %c19_188 = arith.constant 19 : index
    %c0_189 = arith.constant 0 : index
    %180 = vector.load %arg16[%c19_188, %c0_189] : memref<36x4xf32, #tpu.memory_space<vmem>>, vector<4x4xf32>
    %c25_190 = arith.constant 25 : index
    %c0_191 = arith.constant 0 : index
    %181 = vector.load %arg16[%c25_190, %c0_191] : memref<36x4xf32, #tpu.memory_space<vmem>>, vector<4x4xf32>
    %c31_192 = arith.constant 31 : index
    %c0_193 = arith.constant 0 : index
    %182 = vector.load %arg16[%c31_192, %c0_193] : memref<36x4xf32, #tpu.memory_space<vmem>>, vector<4x4xf32>
    %183 = tpu.concatenate %179, %180, %181, %182 in 0 : vector<4x4xf32>, vector<4x4xf32>, vector<4x4xf32>, vector<4x4xf32> -> vector<16x4xf32>
    %c14_194 = arith.constant 14 : index
    %c0_195 = arith.constant 0 : index
    %184 = vector.load %arg16[%c14_194, %c0_195] : memref<36x4xf32, #tpu.memory_space<vmem>>, vector<4x4xf32>
    %c20_196 = arith.constant 20 : index
    %c0_197 = arith.constant 0 : index
    %185 = vector.load %arg16[%c20_196, %c0_197] : memref<36x4xf32, #tpu.memory_space<vmem>>, vector<4x4xf32>
    %c26_198 = arith.constant 26 : index
    %c0_199 = arith.constant 0 : index
    %186 = vector.load %arg16[%c26_198, %c0_199] : memref<36x4xf32, #tpu.memory_space<vmem>>, vector<4x4xf32>
    %c32_200 = arith.constant 32 : index
    %c0_201 = arith.constant 0 : index
    %187 = vector.load %arg16[%c32_200, %c0_201] : memref<36x4xf32, #tpu.memory_space<vmem>>, vector<4x4xf32>
    %188 = tpu.concatenate %184, %185, %186, %187 in 0 : vector<4x4xf32>, vector<4x4xf32>, vector<4x4xf32>, vector<4x4xf32> -> vector<16x4xf32>
    %189 = tpu.concatenate %148, %153, %158, %163, %168, %173, %178, %183, %188 in 1 : vector<16x4xf32>, vector<16x4xf32>, vector<16x4xf32>, vector<16x4xf32>, vector<16x4xf32>, vector<16x4xf32>, vector<16x4xf32>, vector<16x4xf32>, vector<16x4xf32> -> vector<16x36xf32>
    %c0_202 = arith.constant 0 : index
    %c0_203 = arith.constant 0 : index
    %190 = vector.load %arg4[%c0_202, %c0_203] : memref<36x8xf32, #tpu.memory_space<vmem>>, vector<36x8xf32>
    %cst_204 = arith.constant dense<0.000000e+00> : vector<16x8xf32>
    %191 = tpu.matmul %189, %190, %cst_204 {dimension_numbers = #tpu.dot_dimension_numbers<[1], [0], [0], [1], [0, 0, 1, 1], [], []>} : vector<16x36xf32>, vector<36x8xf32>, vector<16x8xf32> -> vector<16x8xf32>
    %c0_205 = arith.constant 0 : index
    %c0_206 = arith.constant 0 : index
    %192 = vector.load %arg5[%c0_205, %c0_206] : memref<1x8xf32, #tpu.memory_space<vmem>>, vector<1x8xf32>
    %193 = vector.broadcast %192 : vector<1x8xf32> to vector<16x8xf32>
    %194 = arith.addf %191, %193 : vector<16x8xf32>
    %cst_207 = arith.constant 0.000000e+00 : f32
    %195 = vector.broadcast %cst_207 : f32 to vector<16x8xf32>
    %196 = arith.cmpf ogt, %194, %195 : vector<16x8xf32>
    %cst_208 = arith.constant 0.00999999977 : f32
    %197 = vector.broadcast %cst_208 : f32 to vector<16x8xf32>
    %198 = arith.mulf %197, %194 : vector<16x8xf32>
    %199 = arith.select %196, %194, %198 : vector<16x8xi1>, vector<16x8xf32>
    %200 = vector.extract_strided_slice %143 {offsets = [0, 0], sizes = [4, 8], strides = [1, 1]} : vector<16x8xf32> to vector<4x8xf32>
    %201 = vector.extract_strided_slice %143 {offsets = [4, 0], sizes = [4, 8], strides = [1, 1]} : vector<16x8xf32> to vector<4x8xf32>
    %202 = arith.maximumf %200, %201 : vector<4x8xf32>
    %203 = vector.extract_strided_slice %143 {offsets = [8, 0], sizes = [4, 8], strides = [1, 1]} : vector<16x8xf32> to vector<4x8xf32>
    %204 = arith.maximumf %202, %203 : vector<4x8xf32>
    %205 = vector.extract_strided_slice %143 {offsets = [12, 0], sizes = [4, 8], strides = [1, 1]} : vector<16x8xf32> to vector<4x8xf32>
    %206 = arith.maximumf %204, %205 : vector<4x8xf32>
    %cst_209 = arith.constant dense<0xFF800000> : vector<8xf32>
    %207 = vector.multi_reduction <maximumf>, %206, %cst_209 [0] : vector<4x8xf32> to vector<8xf32>
    %208 = vector.shape_cast %207 : vector<8xf32> to vector<1x8xf32>
    %c4_210 = arith.constant 4 : index
    %c0_211 = arith.constant 0 : index
    %209 = vector.load %arg17[%c4_210, %c0_211] : memref<9x8xf32, #tpu.memory_space<vmem>>, vector<1x8xf32>
    tpu.vector_store %arg17[%c4_210, %c0_211], %208 {strides = array<i32>} : memref<9x8xf32, #tpu.memory_space<vmem>>, vector<1x8xf32>,
    %210 = vector.extract_strided_slice %199 {offsets = [0, 0], sizes = [4, 8], strides = [1, 1]} : vector<16x8xf32> to vector<4x8xf32>
    %211 = vector.extract_strided_slice %199 {offsets = [4, 0], sizes = [4, 8], strides = [1, 1]} : vector<16x8xf32> to vector<4x8xf32>
    %212 = arith.addf %210, %211 : vector<4x8xf32>
    %213 = vector.extract_strided_slice %199 {offsets = [8, 0], sizes = [4, 8], strides = [1, 1]} : vector<16x8xf32> to vector<4x8xf32>
    %214 = arith.addf %212, %213 : vector<4x8xf32>
    %215 = vector.extract_strided_slice %199 {offsets = [12, 0], sizes = [4, 8], strides = [1, 1]} : vector<16x8xf32> to vector<4x8xf32>
    %216 = arith.addf %214, %215 : vector<4x8xf32>
    %cst_212 = arith.constant dense<0.000000e+00> : vector<8xf32>
    %217 = vector.multi_reduction <add>, %216, %cst_212 [0] : vector<4x8xf32> to vector<8xf32>
    %218 = vector.shape_cast %217 : vector<8xf32> to vector<1x8xf32>
    %cst_213 = arith.constant 6.250000e-02 : f32
    %219 = vector.broadcast %cst_213 : f32 to vector<1x8xf32>
    %220 = arith.mulf %218, %219 : vector<1x8xf32>
    %c4_214 = arith.constant 4 : index
    %c0_215 = arith.constant 0 : index
    %221 = vector.load %arg18[%c4_214, %c0_215] : memref<9x8xf32, #tpu.memory_space<vmem>>, vector<1x8xf32>
    tpu.vector_store %arg18[%c4_214, %c0_215], %220 {strides = array<i32>} : memref<9x8xf32, #tpu.memory_space<vmem>>, vector<1x8xf32>,
    %c0_216 = arith.constant 0 : index
    %c0_217 = arith.constant 0 : index
    %222 = vector.load %arg17[%c0_216, %c0_217] : memref<9x8xf32, #tpu.memory_space<vmem>>, vector<1x8xf32>
    %c1_218 = arith.constant 1 : index
    %c0_219 = arith.constant 0 : index
    %223 = vector.load %arg17[%c1_218, %c0_219] : memref<9x8xf32, #tpu.memory_space<vmem>>, vector<1x8xf32>
    %c2_220 = arith.constant 2 : index
    %c0_221 = arith.constant 0 : index
    %224 = vector.load %arg17[%c2_220, %c0_221] : memref<9x8xf32, #tpu.memory_space<vmem>>, vector<1x8xf32>
    %c3_222 = arith.constant 3 : index
    %c0_223 = arith.constant 0 : index
    %225 = vector.load %arg17[%c3_222, %c0_223] : memref<9x8xf32, #tpu.memory_space<vmem>>, vector<1x8xf32>
    %c4_224 = arith.constant 4 : index
    %c0_225 = arith.constant 0 : index
    %226 = vector.load %arg17[%c4_224, %c0_225] : memref<9x8xf32, #tpu.memory_space<vmem>>, vector<1x8xf32>
    %c5_226 = arith.constant 5 : index
    %c0_227 = arith.constant 0 : index
    %227 = vector.load %arg17[%c5_226, %c0_227] : memref<9x8xf32, #tpu.memory_space<vmem>>, vector<1x8xf32>
    %c6_228 = arith.constant 6 : index
    %c0_229 = arith.constant 0 : index
    %228 = vector.load %arg17[%c6_228, %c0_229] : memref<9x8xf32, #tpu.memory_space<vmem>>, vector<1x8xf32>
    %c7_230 = arith.constant 7 : index
    %c0_231 = arith.constant 0 : index
    %229 = vector.load %arg17[%c7_230, %c0_231] : memref<9x8xf32, #tpu.memory_space<vmem>>, vector<1x8xf32>
    %c8_232 = arith.constant 8 : index
    %c0_233 = arith.constant 0 : index
    %230 = vector.load %arg17[%c8_232, %c0_233] : memref<9x8xf32, #tpu.memory_space<vmem>>, vector<1x8xf32>
    %231 = tpu.concatenate %222, %223, %224, %225, %226, %227, %228, %229, %230 in 1 : vector<1x8xf32>, vector<1x8xf32>, vector<1x8xf32>, vector<1x8xf32>, vector<1x8xf32>, vector<1x8xf32>, vector<1x8xf32>, vector<1x8xf32>, vector<1x8xf32> -> vector<1x72xf32>
    %c0_234 = arith.constant 0 : index
    %c0_235 = arith.constant 0 : index
    %232 = vector.load %arg6[%c0_234, %c0_235] : memref<72x16xf32, #tpu.memory_space<vmem>>, vector<72x16xf32>
    %cst_236 = arith.constant dense<0.000000e+00> : vector<1x16xf32>
    %233 = tpu.matmul %231, %232, %cst_236 {dimension_numbers = #tpu.dot_dimension_numbers<[1], [0], [0], [1], [0, 0, 1, 1], [], []>} : vector<1x72xf32>, vector<72x16xf32>, vector<1x16xf32> -> vector<1x16xf32>
    %c0_237 = arith.constant 0 : index
    %c0_238 = arith.constant 0 : index
    %234 = vector.load %arg7[%c0_237, %c0_238] : memref<1x16xf32, #tpu.memory_space<vmem>>, vector<1x16xf32>
    %235 = arith.addf %233, %234 : vector<1x16xf32>
    %cst_239 = arith.constant 0.000000e+00 : f32
    %236 = vector.broadcast %cst_239 : f32 to vector<1x16xf32>
    %237 = arith.cmpf ogt, %235, %236 : vector<1x16xf32>
    %cst_240 = arith.constant 0.00999999977 : f32
    %238 = vector.broadcast %cst_240 : f32 to vector<1x16xf32>
    %239 = arith.mulf %238, %235 : vector<1x16xf32>
    %240 = arith.select %237, %235, %239 : vector<1x16xi1>, vector<1x16xf32>
    %c0_241 = arith.constant 0 : index
    %c0_242 = arith.constant 0 : index
    %241 = vector.load %arg18[%c0_241, %c0_242] : memref<9x8xf32, #tpu.memory_space<vmem>>, vector<1x8xf32>
    %c1_243 = arith.constant 1 : index
    %c0_244 = arith.constant 0 : index
    %242 = vector.load %arg18[%c1_243, %c0_244] : memref<9x8xf32, #tpu.memory_space<vmem>>, vector<1x8xf32>
    %c2_245 = arith.constant 2 : index
    %c0_246 = arith.constant 0 : index
    %243 = vector.load %arg18[%c2_245, %c0_246] : memref<9x8xf32, #tpu.memory_space<vmem>>, vector<1x8xf32>
    %c3_247 = arith.constant 3 : index
    %c0_248 = arith.constant 0 : index
    %244 = vector.load %arg18[%c3_247, %c0_248] : memref<9x8xf32, #tpu.memory_space<vmem>>, vector<1x8xf32>
    %c4_249 = arith.constant 4 : index
    %c0_250 = arith.constant 0 : index
    %245 = vector.load %arg18[%c4_249, %c0_250] : memref<9x8xf32, #tpu.memory_space<vmem>>, vector<1x8xf32>
    %c5_251 = arith.constant 5 : index
    %c0_252 = arith.constant 0 : index
    %246 = vector.load %arg18[%c5_251, %c0_252] : memref<9x8xf32, #tpu.memory_space<vmem>>, vector<1x8xf32>
    %c6_253 = arith.constant 6 : index
    %c0_254 = arith.constant 0 : index
    %247 = vector.load %arg18[%c6_253, %c0_254] : memref<9x8xf32, #tpu.memory_space<vmem>>, vector<1x8xf32>
    %c7_255 = arith.constant 7 : index
    %c0_256 = arith.constant 0 : index
    %248 = vector.load %arg18[%c7_255, %c0_256] : memref<9x8xf32, #tpu.memory_space<vmem>>, vector<1x8xf32>
    %c8_257 = arith.constant 8 : index
    %c0_258 = arith.constant 0 : index
    %249 = vector.load %arg18[%c8_257, %c0_258] : memref<9x8xf32, #tpu.memory_space<vmem>>, vector<1x8xf32>
    %250 = tpu.concatenate %241, %242, %243, %244, %245, %246, %247, %248, %249 in 1 : vector<1x8xf32>, vector<1x8xf32>, vector<1x8xf32>, vector<1x8xf32>, vector<1x8xf32>, vector<1x8xf32>, vector<1x8xf32>, vector<1x8xf32>, vector<1x8xf32> -> vector<1x72xf32>
    %c0_259 = arith.constant 0 : index
    %c0_260 = arith.constant 0 : index
    %251 = vector.load %arg8[%c0_259, %c0_260] : memref<72x16xf32, #tpu.memory_space<vmem>>, vector<72x16xf32>
    %cst_261 = arith.constant dense<0.000000e+00> : vector<1x16xf32>
    %252 = tpu.matmul %250, %251, %cst_261 {dimension_numbers = #tpu.dot_dimension_numbers<[1], [0], [0], [1], [0, 0, 1, 1], [], []>} : vector<1x72xf32>, vector<72x16xf32>, vector<1x16xf32> -> vector<1x16xf32>
    %c0_262 = arith.constant 0 : index
    %c0_263 = arith.constant 0 : index
    %253 = vector.load %arg9[%c0_262, %c0_263] : memref<1x16xf32, #tpu.memory_space<vmem>>, vector<1x16xf32>
    %254 = arith.addf %252, %253 : vector<1x16xf32>
    %cst_264 = arith.constant 0.000000e+00 : f32
    %255 = vector.broadcast %cst_264 : f32 to vector<1x16xf32>
    %256 = arith.cmpf ogt, %254, %255 : vector<1x16xf32>
    %cst_265 = arith.constant 0.00999999977 : f32
    %257 = vector.broadcast %cst_265 : f32 to vector<1x16xf32>
    %258 = arith.mulf %257, %254 : vector<1x16xf32>
    %259 = arith.select %256, %254, %258 : vector<1x16xi1>, vector<1x16xf32>
    %260 = tpu.concatenate %240, %259 in 1 : vector<1x16xf32>, vector<1x16xf32> -> vector<1x32xf32>
    %c0_266 = arith.constant 0 : index
    %c0_267 = arith.constant 0 : index
    %261 = vector.load %arg10[%c0_266, %c0_267] : memref<32x32xf32, #tpu.memory_space<vmem>>, vector<32x32xf32>
    %cst_268 = arith.constant dense<0.000000e+00> : vector<1x32xf32>
    %262 = tpu.matmul %260, %261, %cst_268 {dimension_numbers = #tpu.dot_dimension_numbers<[1], [0], [0], [1], [0, 0, 1, 1], [], []>} : vector<1x32xf32>, vector<32x32xf32>, vector<1x32xf32> -> vector<1x32xf32>
    %c0_269 = arith.constant 0 : index
    %c0_270 = arith.constant 0 : index
    %263 = vector.load %arg11[%c0_269, %c0_270] : memref<1x32xf32, #tpu.memory_space<vmem>>, vector<1x32xf32>
    %264 = arith.addf %262, %263 : vector<1x32xf32>
    %cst_271 = arith.constant 0.000000e+00 : f32
    %265 = vector.broadcast %cst_271 : f32 to vector<1x32xf32>
    %266 = arith.cmpf ogt, %264, %265 : vector<1x32xf32>
    %cst_272 = arith.constant 0.00999999977 : f32
    %267 = vector.broadcast %cst_272 : f32 to vector<1x32xf32>
    %268 = arith.mulf %267, %264 : vector<1x32xf32>
    %269 = arith.select %266, %264, %268 : vector<1x32xi1>, vector<1x32xf32>
    %c0_273 = arith.constant 0 : index
    %c0_274 = arith.constant 0 : index
    %270 = vector.load %arg12[%c0_273, %c0_274] : memref<32x5xf32, #tpu.memory_space<vmem>>, vector<32x5xf32>
    %cst_275 = arith.constant dense<0.000000e+00> : vector<1x5xf32>
    %271 = tpu.matmul %269, %270, %cst_275 {dimension_numbers = #tpu.dot_dimension_numbers<[1], [0], [0], [1], [0, 0, 1, 1], [], []>} : vector<1x32xf32>, vector<32x5xf32>, vector<1x5xf32> -> vector<1x5xf32>
    %c0_276 = arith.constant 0 : index
    %c0_277 = arith.constant 0 : index
    %272 = vector.load %arg13[%c0_276, %c0_277] : memref<1x5xf32, #tpu.memory_space<vmem>>, vector<1x5xf32>
    %273 = arith.addf %271, %272 : vector<1x5xf32>
    %cst_278 = arith.constant 0.000000e+00 : f32
    %274 = vector.broadcast %cst_278 : f32 to vector<1x5xf32>
    %275 = arith.cmpf ogt, %273, %274 : vector<1x5xf32>
    %cst_279 = arith.constant 0.00999999977 : f32
    %276 = vector.broadcast %cst_279 : f32 to vector<1x5xf32>
    %277 = arith.mulf %276, %273 : vector<1x5xf32>
    %278 = arith.select %275, %273, %277 : vector<1x5xi1>, vector<1x5xf32>
    %c0_280 = arith.constant 0 : index
    %c0_281 = arith.constant 0 : index
    %c0_282 = arith.constant 0 : index
    %279 = vector.load %arg14[%c0_280, %c0_281, %c0_282] : memref<1x1x5xf32, #tpu.memory_space<vmem>>, vector<1x1x5xf32>
    %280 = vector.shape_cast %279 : vector<1x1x5xf32> to vector<1x5xf32>
    %281 = vector.shape_cast %278 : vector<1x5xf32> to vector<1x1x5xf32>
    tpu.vector_store %arg14[%c0_280, %c0_281, %c0_282], %281 {strides = array<i32>} : memref<1x1x5xf32, #tpu.memory_space<vmem>>, vector<1x1x5xf32>,
    return
  }
  func.func @transform_0(%arg0: i32) -> (i32, i32, i32) {
    %c0_i32 = arith.constant 0 : i32
    %c0_i32_0 = arith.constant 0 : i32
    %c0_i32_1 = arith.constant 0 : i32
    return %c0_i32, %arg0, %c0_i32_0 : i32, i32, i32
  }
  func.func @transform_1(%arg0: i32) -> (i32, i32) {
    %c0_i32 = arith.constant 0 : i32
    %c0_i32_0 = arith.constant 0 : i32
    %c0_i32_1 = arith.constant 0 : i32
    return %c0_i32, %c0_i32_0 : i32, i32
  }
  func.func @transform_2(%arg0: i32) -> (i32, i32) {
    %c0_i32 = arith.constant 0 : i32
    %c0_i32_0 = arith.constant 0 : i32
    %c0_i32_1 = arith.constant 0 : i32
    return %c0_i32, %c0_i32_0 : i32, i32
  }
  func.func @transform_3(%arg0: i32) -> (i32, i32) {
    %c0_i32 = arith.constant 0 : i32
    %c0_i32_0 = arith.constant 0 : i32
    %c0_i32_1 = arith.constant 0 : i32
    return %c0_i32, %c0_i32_0 : i32, i32
  }
  func.func @transform_4(%arg0: i32) -> (i32, i32) {
    %c0_i32 = arith.constant 0 : i32
    %c0_i32_0 = arith.constant 0 : i32
    %c0_i32_1 = arith.constant 0 : i32
    return %c0_i32, %c0_i32_0 : i32, i32
  }
  func.func @transform_5(%arg0: i32) -> (i32, i32) {
    %c0_i32 = arith.constant 0 : i32
    %c0_i32_0 = arith.constant 0 : i32
    %c0_i32_1 = arith.constant 0 : i32
    return %c0_i32, %c0_i32_0 : i32, i32
  }
  func.func @transform_6(%arg0: i32) -> (i32, i32) {
    %c0_i32 = arith.constant 0 : i32
    %c0_i32_0 = arith.constant 0 : i32
    %c0_i32_1 = arith.constant 0 : i32
    return %c0_i32, %c0_i32_0 : i32, i32
  }
  func.func @transform_7(%arg0: i32) -> (i32, i32) {
    %c0_i32 = arith.constant 0 : i32
    %c0_i32_0 = arith.constant 0 : i32
    %c0_i32_1 = arith.constant 0 : i32
    return %c0_i32, %c0_i32_0 : i32, i32
  }
  func.func @transform_8(%arg0: i32) -> (i32, i32) {
    %c0_i32 = arith.constant 0 : i32
    %c0_i32_0 = arith.constant 0 : i32
    %c0_i32_1 = arith.constant 0 : i32
    return %c0_i32, %c0_i32_0 : i32, i32
  }
  func.func @transform_9(%arg0: i32) -> (i32, i32) {
    %c0_i32 = arith.constant 0 : i32
    %c0_i32_0 = arith.constant 0 : i32
    %c0_i32_1 = arith.constant 0 : i32
    return %c0_i32, %c0_i32_0 : i32, i32
  }
  func.func @transform_10(%arg0: i32) -> (i32, i32) {
    %c0_i32 = arith.constant 0 : i32
    %c0_i32_0 = arith.constant 0 : i32
    %c0_i32_1 = arith.constant 0 : i32
    return %c0_i32, %c0_i32_0 : i32, i32
  }
  func.func @transform_11(%arg0: i32) -> (i32, i32) {
    %c0_i32 = arith.constant 0 : i32
    %c0_i32_0 = arith.constant 0 : i32
    %c0_i32_1 = arith.constant 0 : i32
    return %c0_i32, %c0_i32_0 : i32, i32
  }
  func.func @transform_12(%arg0: i32) -> (i32, i32) {
    %c0_i32 = arith.constant 0 : i32
    %c0_i32_0 = arith.constant 0 : i32
    %c0_i32_1 = arith.constant 0 : i32
    return %c0_i32, %c0_i32_0 : i32, i32
  }
  func.func @transform_13(%arg0: i32) -> (i32, i32, i32) {
    %c0_i32 = arith.constant 0 : i32
    %c0_i32_0 = arith.constant 0 : i32
    %c0_i32_1 = arith.constant 0 : i32
    return %arg0, %c0_i32, %c0_i32_0 : i32, i32, i32
  }
}

</mosaic_0001>

<llo_original>
// kernel: _lambda_.1
$region0: #{_lambda_.1}
  #allocation0 [shape = 'u32[]', space=smem, size = 0x4, offset = 0x4, fixed_abs, tag = 'smem constant byte address 0x4 - core index']
  #allocation1 [shape = 'u32[144,128]{1,0:T(1,128)}', space=vmem, size = 0x12000, scoped, tag = 'internal scratch']
  #allocation2 [shape = 'f32[36,4]{1,0:T(8,128)}', space=vmem, size = 0x5000, scoped, tag = 'scratch operand']
  #allocation3 [shape = 'f32[36,4]{1,0:T(8,128)}', space=vmem, size = 0x5000, scoped, tag = 'scratch operand']
  #allocation4 [shape = 'f32[9,8]{1,0:T(8,128)}', space=vmem, size = 0x2000, scoped, tag = 'scratch operand']
  #allocation5 [shape = 'f32[9,8]{1,0:T(8,128)}', space=vmem, size = 0x2000, scoped, tag = 'scratch operand']
  %s0 = inlined_call_operand.vmem [shape: f32[16,32,4], index: 0, kind: input, shape index: {}]
  %s1 = inlined_call_operand.vmem [shape: f32[36,8], index: 1, kind: input, shape index: {}]
  %s2 = inlined_call_operand.vmem [shape: f32[1,8], index: 2, kind: input, shape index: {}]
  %s3 = inlined_call_operand.vmem [shape: f32[36,8], index: 3, kind: input, shape index: {}]
  %s4 = inlined_call_operand.vmem [shape: f32[1,8], index: 4, kind: input, shape index: {}]
  %s5 = inlined_call_operand.vmem [shape: f32[72,16], index: 5, kind: input, shape index: {}]
  %s6 = inlined_call_operand.vmem [shape: f32[1,16], index: 6, kind: input, shape index: {}]
  %s7 = inlined_call_operand.vmem [shape: f32[72,16], index: 7, kind: input, shape index: {}]
  %s8 = inlined_call_operand.vmem [shape: f32[1,16], index: 8, kind: input, shape index: {}]
  %s9 = inlined_call_operand.vmem [shape: f32[32,32], index: 9, kind: input, shape index: {}]
  %s10 = inlined_call_operand.vmem [shape: f32[1,32], index: 10, kind: input, shape index: {}]
  %s11 = inlined_call_operand.vmem [shape: f32[32,5], index: 11, kind: input, shape index: {}]
  %s12 = inlined_call_operand.vmem [shape: f32[1,5], index: 12, kind: input, shape index: {}]
  %s13 = inlined_call_operand.hbm [shape: f32[2,1,5], index: 13, kind: output, shape index: {}]
  %s14 = sld [smem:[#allocation0]]
  $region123: #{_lambda_.1} parent=0
    _
  %s16 = ssub.s32 1, %s14
  %s17 = scalar_select 0, %s16, %s14
  $region1: #{_lambda_.1} parent=0
    #allocation6 [shape = 'u8[262144]{0}', space=vmem, size = 0x40000, scoped, tag = 'input window, operand 0']
    #allocation7 [shape = 'u8[1024]{0}', space=vmem, size = 0x400, scoped, tag = 'output window, operand 0']
    #allocation8 [shape = 's32[2]{0}', space=sflag, size = 0x8, scoped, tag = 'scoped memory for _lambda_.1']
    %18 = vsyncpa [#allocation8], 0
    %s19 = scalar_lea.sflag [#allocation8], 1
    %20 = vsyncpa %s19, 0
    loop: start=0, step=1, limit=4
    $region2: #{_lambda_.1} parent=1 // loop_pre_header
      _
    $region3: #{_lambda_.1} parent=1 // loop_header
      %s22 = sphi 0, %s26
      %p23 = scmp.ge.s32.totalorder %s22, 4
      %s32 = sphi 0, %s34
      %s35 = sphi 0, %s32
      %s36 = sphi 0, %s35
      %s52 = sphi 0, %s36
      %s56 = sphi 0, %s56
      %s58 = sphi 0, %s56
      %s59 = sphi 0, %s58
      %s73 = sphi 0, %s59
      %s77 = sphi 0, %s77
      %s79 = sphi 0, %s77
      %s80 = sphi 0, %s79
      %s94 = sphi 0, %s80
      %s98 = sphi 0, %s98
      %s100 = sphi 0, %s98
      %s101 = sphi 0, %s100
      %s115 = sphi 0, %s101
      %s119 = sphi 0, %s119
      %s121 = sphi 0, %s119
      %s122 = sphi 0, %s121
      %s136 = sphi 0, %s122
      %s140 = sphi 0, %s140
      %s142 = sphi 0, %s140
      %s143 = sphi 0, %s142
      %s157 = sphi 0, %s143
      %s161 = sphi 0, %s161
      %s163 = sphi 0, %s161
      %s164 = sphi 0, %s163
      %s178 = sphi 0, %s164
      %s182 = sphi 0, %s182
      %s184 = sphi 0, %s182
      %s185 = sphi 0, %s184
      %s199 = sphi 0, %s185
      %s203 = sphi 0, %s203
      %s205 = sphi 0, %s203
      %s206 = sphi 0, %s205
      %s220 = sphi 0, %s206
      %s224 = sphi 0, %s224
      %s226 = sphi 0, %s224
      %s227 = sphi 0, %s226
      %s241 = sphi 0, %s227
      %s245 = sphi 0, %s245
      %s247 = sphi 0, %s245
      %s248 = sphi 0, %s247
      %s262 = sphi 0, %s248
      %s266 = sphi 0, %s266
      %s268 = sphi 0, %s266
      %s269 = sphi 0, %s268
      %s283 = sphi 0, %s269
      %s287 = sphi 0, %s287
      %s289 = sphi 0, %s287
      %s290 = sphi 0, %s289
      %s304 = sphi 0, %s290
      %s310 = sphi 0, %s312
      %s313 = sphi 0, %s310
      %s314 = sphi 0, %s313
      %s330 = sphi 0, %s314
    $region4: #{_lambda_.1} parent=1 // loop_header_branch
      %25 = sbr.rel (%p23) target = $region8
    $region5: #{_lambda_.1} parent=1 // loop_body
      %s27 = ssub.s32 %s22, 1
      %s28 = ssub.s32 %s22, 2
      %s29 = sadd.s32 %s22, 1
      %s30 = ssub.s32 %s22, %s29
      %p31 = scmp.eq.s32.totalorder %s30, 0
      %s33 = sadd.s32 %s32, 1
      %s34 = scalar_select %p31, %s32, %s33
      %p37 = pneg %p31
      %p38 = scmp.eq.s32.totalorder %s22, 1
      %p39 = por %p37, %p38
      %p40 = scmp.ne.s32.totalorder %s32, %s35
      %p41 = scmp.eq.s32.totalorder %s22, 0
      %p42 = por %p40, %p41
      %p43 = scmp.ne.s32.totalorder %s32, %s35
      %p44 = scmp.eq.s32.totalorder %s27, 1
      %p45 = por %p43, %p44
      %p46 = scmp.ne.s32.totalorder %s35, %s36
      %p47 = scmp.eq.s32.totalorder %s27, 0
      %p48 = por %p46, %p47
      %p49 = scmp.ne.s32.totalorder %s35, %s36
      %p50 = scmp.eq.s32.totalorder %s28, 1
      %p51 = por %p49, %p50
      %p53 = scmp.ne.s32.totalorder %s36, %s52
      %p54 = scmp.eq.s32.totalorder %s28, 0
      %p55 = por %p53, %p54
      %s57 = sadd.s32 %s56, 1
      %p60 = scmp.eq.s32.totalorder %s22, 1
      %p61 = scmp.ne.s32.totalorder %s56, %s58
      %p62 = scmp.eq.s32.totalorder %s22, 0
      %p63 = por %p61, %p62
      %p64 = scmp.ne.s32.totalorder %s56, %s58
      %p65 = scmp.eq.s32.totalorder %s27, 1
      %p66 = por %p64, %p65
      %p67 = scmp.ne.s32.totalorder %s58, %s59
      %p68 = scmp.eq.s32.totalorder %s27, 0
      %p69 = por %p67, %p68
      %p70 = scmp.ne.s32.totalorder %s58, %s59
      %p71 = scmp.eq.s32.totalorder %s28, 1
      %p72 = por %p70, %p71
      %p74 = scmp.ne.s32.totalorder %s59, %s73
      %p75 = scmp.eq.s32.totalorder %s28, 0
      %p76 = por %p74, %p75
      %s78 = sadd.s32 %s77, 1
      %p81 = scmp.eq.s32.totalorder %s22, 1
      %p82 = scmp.ne.s32.totalorder %s77, %s79
      %p83 = scmp.eq.s32.totalorder %s22, 0
      %p84 = por %p82, %p83
      %p85 = scmp.ne.s32.totalorder %s77, %s79
      %p86 = scmp.eq.s32.totalorder %s27, 1
      %p87 = por %p85, %p86
      %p88 = scmp.ne.s32.totalorder %s79, %s80
      %p89 = scmp.eq.s32.totalorder %s27, 0
      %p90 = por %p88, %p89
      %p91 = scmp.ne.s32.totalorder %s79, %s80
      %p92 = scmp.eq.s32.totalorder %s28, 1
      %p93 = por %p91, %p92
      %p95 = scmp.ne.s32.totalorder %s80, %s94
      %p96 = scmp.eq.s32.totalorder %s28, 0
      %p97 = por %p95, %p96
      %s99 = sadd.s32 %s98, 1
      %p102 = scmp.eq.s32.totalorder %s22, 1
      %p103 = scmp.ne.s32.totalorder %s98, %s100
      %p104 = scmp.eq.s32.totalorder %s22, 0
      %p105 = por %p103, %p104
      %p106 = scmp.ne.s32.totalorder %s98, %s100
      %p107 = scmp.eq.s32.totalorder %s27, 1
      %p108 = por %p106, %p107
      %p109 = scmp.ne.s32.totalorder %s100, %s101
      %p110 = scmp.eq.s32.totalorder %s27, 0
      %p111 = por %p109, %p110
      %p112 = scmp.ne.s32.totalorder %s100, %s101
      %p113 = scmp.eq.s32.totalorder %s28, 1
      %p114 = por %p112, %p113
      %p116 = scmp.ne.s32.totalorder %s101, %s115
      %p117 = scmp.eq.s32.totalorder %s28, 0
      %p118 = por %p116, %p117
      %s120 = sadd.s32 %s119, 1
      %p123 = scmp.eq.s32.totalorder %s22, 1
      %p124 = scmp.ne.s32.totalorder %s119, %s121
      %p125 = scmp.eq.s32.totalorder %s22, 0
      %p126 = por %p124, %p125
      %p127 = scmp.ne.s32.totalorder %s119, %s121
      %p128 = scmp.eq.s32.totalorder %s27, 1
      %p129 = por %p127, %p128
      %p130 = scmp.ne.s32.totalorder %s121, %s122
      %p131 = scmp.eq.s32.totalorder %s27, 0
      %p132 = por %p130, %p131
      %p133 = scmp.ne.s32.totalorder %s121, %s122
      %p134 = scmp.eq.s32.totalorder %s28, 1
      %p135 = por %p133, %p134
      %p137 = scmp.ne.s32.totalorder %s122, %s136
      %p138 = scmp.eq.s32.totalorder %s28, 0
      %p139 = por %p137, %p138
      %s141 = sadd.s32 %s140, 1
      %p144 = scmp.eq.s32.totalorder %s22, 1
      %p145 = scmp.ne.s32.totalorder %s140, %s142
      %p146 = scmp.eq.s32.totalorder %s22, 0
      %p147 = por %p145, %p146
      %p148 = scmp.ne.s32.totalorder %s140, %s142
      %p149 = scmp.eq.s32.totalorder %s27, 1
      %p150 = por %p148, %p149
      %p151 = scmp.ne.s32.totalorder %s142, %s143
      %p152 = scmp.eq.s32.totalorder %s27, 0
      %p153 = por %p151, %p152
      %p154 = scmp.ne.s32.totalorder %s142, %s143
      %p155 = scmp.eq.s32.totalorder %s28, 1
      %p156 = por %p154, %p155
      %p158 = scmp.ne.s32.totalorder %s143, %s157
      %p159 = scmp.eq.s32.totalorder %s28, 0
      %p160 = por %p158, %p159
      %s162 = sadd.s32 %s161, 1
      %p165 = scmp.eq.s32.totalorder %s22, 1
      %p166 = scmp.ne.s32.totalorder %s161, %s163
      %p167 = scmp.eq.s32.totalorder %s22, 0
      %p168 = por %p166, %p167
      %p169 = scmp.ne.s32.totalorder %s161, %s163
      %p170 = scmp.eq.s32.totalorder %s27, 1
      %p171 = por %p169, %p170
      %p172 = scmp.ne.s32.totalorder %s163, %s164
      %p173 = scmp.eq.s32.totalorder %s27, 0
      %p174 = por %p172, %p173
      %p175 = scmp.ne.s32.totalorder %s163, %s164
      %p176 = scmp.eq.s32.totalorder %s28, 1
      %p177 = por %p175, %p176
      %p179 = scmp.ne.s32.totalorder %s164, %s178
      %p180 = scmp.eq.s32.totalorder %s28, 0
      %p181 = por %p179, %p180
      %s183 = sadd.s32 %s182, 1
      %p186 = scmp.eq.s32.totalorder %s22, 1
      %p187 = scmp.ne.s32.totalorder %s182, %s184
      %p188 = scmp.eq.s32.totalorder %s22, 0
      %p189 = por %p187, %p188
      %p190 = scmp.ne.s32.totalorder %s182, %s184
      %p191 = scmp.eq.s32.totalorder %s27, 1
      %p192 = por %p190, %p191
      %p193 = scmp.ne.s32.totalorder %s184, %s185
      %p194 = scmp.eq.s32.totalorder %s27, 0
      %p195 = por %p193, %p194
      %p196 = scmp.ne.s32.totalorder %s184, %s185
      %p197 = scmp.eq.s32.totalorder %s28, 1
      %p198 = por %p196, %p197
      %p200 = scmp.ne.s32.totalorder %s185, %s199
      %p201 = scmp.eq.s32.totalorder %s28, 0
      %p202 = por %p200, %p201
      %s204 = sadd.s32 %s203, 1
      %p207 = scmp.eq.s32.totalorder %s22, 1
      %p208 = scmp.ne.s32.totalorder %s203, %s205
      %p209 = scmp.eq.s32.totalorder %s22, 0
      %p210 = por %p208, %p209
      %p211 = scmp.ne.s32.totalorder %s203, %s205
      %p212 = scmp.eq.s32.totalorder %s27, 1
      %p213 = por %p211, %p212
      %p214 = scmp.ne.s32.totalorder %s205, %s206
      %p215 = scmp.eq.s32.totalorder %s27, 0
      %p216 = por %p214, %p215
      %p217 = scmp.ne.s32.totalorder %s205, %s206
      %p218 = scmp.eq.s32.totalorder %s28, 1
      %p219 = por %p217, %p218
      %p221 = scmp.ne.s32.totalorder %s206, %s220
      %p222 = scmp.eq.s32.totalorder %s28, 0
      %p223 = por %p221, %p222
      %s225 = sadd.s32 %s224, 1
      %p228 = scmp.eq.s32.totalorder %s22, 1
      %p229 = scmp.ne.s32.totalorder %s224, %s226
      %p230 = scmp.eq.s32.totalorder %s22, 0
      %p231 = por %p229, %p230
      %p232 = scmp.ne.s32.totalorder %s224, %s226
      %p233 = scmp.eq.s32.totalorder %s27, 1
      %p234 = por %p232, %p233
      %p235 = scmp.ne.s32.totalorder %s226, %s227
      %p236 = scmp.eq.s32.totalorder %s27, 0
      %p237 = por %p235, %p236
      %p238 = scmp.ne.s32.totalorder %s226, %s227
      %p239 = scmp.eq.s32.totalorder %s28, 1
      %p240 = por %p238, %p239
      %p242 = scmp.ne.s32.totalorder %s227, %s241
      %p243 = scmp.eq.s32.totalorder %s28, 0
      %p244 = por %p242, %p243
      %s246 = sadd.s32 %s245, 1
      %p249 = scmp.eq.s32.totalorder %s22, 1
      %p250 = scmp.ne.s32.totalorder %s245, %s247
      %p251 = scmp.eq.s32.totalorder %s22, 0
      %p252 = por %p250, %p251
      %p253 = scmp.ne.s32.totalorder %s245, %s247
      %p254 = scmp.eq.s32.totalorder %s27, 1
      %p255 = por %p253, %p254
      %p256 = scmp.ne.s32.totalorder %s247, %s248
      %p257 = scmp.eq.s32.totalorder %s27, 0
      %p258 = por %p256, %p257
      %p259 = scmp.ne.s32.totalorder %s247, %s248
      %p260 = scmp.eq.s32.totalorder %s28, 1
      %p261 = por %p259, %p260
      %p263 = scmp.ne.s32.totalorder %s248, %s262
      %p264 = scmp.eq.s32.totalorder %s28, 0
      %p265 = por %p263, %p264
      %s267 = sadd.s32 %s266, 1
      %p270 = scmp.eq.s32.totalorder %s22, 1
      %p271 = scmp.ne.s32.totalorder %s266, %s268
      %p272 = scmp.eq.s32.totalorder %s22, 0
      %p273 = por %p271, %p272
      %p274 = scmp.ne.s32.totalorder %s266, %s268
      %p275 = scmp.eq.s32.totalorder %s27, 1
      %p276 = por %p274, %p275
      %p277 = scmp.ne.s32.totalorder %s268, %s269
      %p278 = scmp.eq.s32.totalorder %s27, 0
      %p279 = por %p277, %p278
      %p280 = scmp.ne.s32.totalorder %s268, %s269
      %p281 = scmp.eq.s32.totalorder %s28, 1
      %p282 = por %p280, %p281
      %p284 = scmp.ne.s32.totalorder %s269, %s283
      %p285 = scmp.eq.s32.totalorder %s28, 0
      %p286 = por %p284, %p285
      %s288 = sadd.s32 %s287, 1
      %p291 = scmp.eq.s32.totalorder %s22, 1
      %p292 = scmp.ne.s32.totalorder %s287, %s289
      %p293 = scmp.eq.s32.totalorder %s22, 0
      %p294 = por %p292, %p293
      %p295 = scmp.ne.s32.totalorder %s287, %s289
      %p296 = scmp.eq.s32.totalorder %s27, 1
      %p297 = por %p295, %p296
      %p298 = scmp.ne.s32.totalorder %s289, %s290
      %p299 = scmp.eq.s32.totalorder %s27, 0
      %p300 = por %p298, %p299
      %p301 = scmp.ne.s32.totalorder %s289, %s290
      %p302 = scmp.eq.s32.totalorder %s28, 1
      %p303 = por %p301, %p302
      %p305 = scmp.ne.s32.totalorder %s290, %s304
      %p306 = scmp.eq.s32.totalorder %s28, 0
      %p307 = por %p305, %p306
      %s308 = ssub.s32 %s22, %s29
      %p309 = scmp.eq.s32.totalorder %s308, 0
      %s311 = sadd.s32 %s310, 1
      %s312 = scalar_select %p309, %s310, %s311
      %p315 = pneg %p309
      %p316 = scmp.eq.s32.totalorder %s22, 1
      %p317 = por %p315, %p316
      %p318 = scmp.ne.s32.totalorder %s310, %s313
      %p319 = scmp.eq.s32.totalorder %s22, 0
      %p320 = por %p318, %p319
      %p321 = scmp.ne.s32.totalorder %s310, %s313
      %p322 = scmp.eq.s32.totalorder %s27, 1
      %p323 = por %p321, %p322
      %p324 = scmp.ne.s32.totalorder %s313, %s314
      %p325 = scmp.eq.s32.totalorder %s27, 0
      %p326 = por %p324, %p325
      %p327 = scmp.ne.s32.totalorder %s313, %s314
      %p328 = scmp.eq.s32.totalorder %s28, 1
      %p329 = por %p327, %p328
      %p331 = scmp.ne.s32.totalorder %s314, %s330
      %p332 = scmp.eq.s32.totalorder %s28, 0
      %p333 = por %p331, %p332
      %p334 = scmp.le.s32.totalorder 1, %s22
      %p335 = scmp.lt.s32.totalorder %s22, 3
      %p336 = pnand %p334, %p335
      %p337 = pneg %p336
      // Predicated region
      $region9: #{_lambda_.1} parent=5 // pred_check
        _
      $region10: #{_lambda_.1} parent=5 // pred_check_branch
        %339 = sbr.rel (%p336) target = $region12
      $region11: #{_lambda_.1} parent=5 // pred_region
        %s340 = ssub.s32 %s22, 1
        // Predicated region
        $region13: #{_lambda_.1} parent=11 // pred_check
          %p341 = pneg %p69
        $region14: #{_lambda_.1} parent=11 // pred_check_branch
          %343 = sbr.rel (%p341) target = $region16
        $region15: #{_lambda_.1} parent=11 // pred_region
          _
        $region16: #{_lambda_.1} parent=11 // pred_fallthru
          _
        // Predicated region
        $region17: #{_lambda_.1} parent=11 // pred_check
          %p344 = pneg %p90
        $region18: #{_lambda_.1} parent=11 // pred_check_branch
          %346 = sbr.rel (%p344) target = $region20
        $region19: #{_lambda_.1} parent=11 // pred_region
          _
        $region20: #{_lambda_.1} parent=11 // pred_fallthru
          _
        // Predicated region
        $region21: #{_lambda_.1} parent=11 // pred_check
          %p347 = pneg %p111
        $region22: #{_lambda_.1} parent=11 // pred_check_branch
          %349 = sbr.rel (%p347) target = $region24
        $region23: #{_lambda_.1} parent=11 // pred_region
          _
        $region24: #{_lambda_.1} parent=11 // pred_fallthru
          _
        // Predicated region
        $region25: #{_lambda_.1} parent=11 // pred_check
          %p350 = pneg %p132
        $region26: #{_lambda_.1} parent=11 // pred_check_branch
          %352 = sbr.rel (%p350) target = $region28
        $region27: #{_lambda_.1} parent=11 // pred_region
          _
        $region28: #{_lambda_.1} parent=11 // pred_fallthru
          _
        // Predicated region
        $region29: #{_lambda_.1} parent=11 // pred_check
          %p353 = pneg %p153
        $region30: #{_lambda_.1} parent=11 // pred_check_branch
          %355 = sbr.rel (%p353) target = $region32
        $region31: #{_lambda_.1} parent=11 // pred_region
          _
        $region32: #{_lambda_.1} parent=11 // pred_fallthru
          _
        // Predicated region
        $region33: #{_lambda_.1} parent=11 // pred_check
          %p356 = pneg %p174
        $region34: #{_lambda_.1} parent=11 // pred_check_branch
          %358 = sbr.rel (%p356) target = $region36
        $region35: #{_lambda_.1} parent=11 // pred_region
          _
        $region36: #{_lambda_.1} parent=11 // pred_fallthru
          _
        // Predicated region
        $region37: #{_lambda_.1} parent=11 // pred_check
          %p359 = pneg %p195
        $region38: #{_lambda_.1} parent=11 // pred_check_branch
          %361 = sbr.rel (%p359) target = $region40
        $region39: #{_lambda_.1} parent=11 // pred_region
          _
        $region40: #{_lambda_.1} parent=11 // pred_fallthru
          _
        // Predicated region
        $region41: #{_lambda_.1} parent=11 // pred_check
          %p362 = pneg %p216
        $region42: #{_lambda_.1} parent=11 // pred_check_branch
          %364 = sbr.rel (%p362) target = $region44
        $region43: #{_lambda_.1} parent=11 // pred_region
          _
        $region44: #{_lambda_.1} parent=11 // pred_fallthru
          _
        // Predicated region
        $region45: #{_lambda_.1} parent=11 // pred_check
          %p365 = pneg %p237
        $region46: #{_lambda_.1} parent=11 // pred_check_branch
          %367 = sbr.rel (%p365) target = $region48
        $region47: #{_lambda_.1} parent=11 // pred_region
          _
        $region48: #{_lambda_.1} parent=11 // pred_fallthru
          _
        // Predicated region
        $region49: #{_lambda_.1} parent=11 // pred_check
          %p368 = pneg %p258
        $region50: #{_lambda_.1} parent=11 // pred_check_branch
          %370 = sbr.rel (%p368) target = $region52
        $region51: #{_lambda_.1} parent=11 // pred_region
          _
        $region52: #{_lambda_.1} parent=11 // pred_fallthru
          _
        // Predicated region
        $region53: #{_lambda_.1} parent=11 // pred_check
          %p371 = pneg %p279
        $region54: #{_lambda_.1} parent=11 // pred_check_branch
          %373 = sbr.rel (%p371) target = $region56
        $region55: #{_lambda_.1} parent=11 // pred_region
          _
        $region56: #{_lambda_.1} parent=11 // pred_fallthru
          _
        // Predicated region
        $region57: #{_lambda_.1} parent=11 // pred_check
          %p374 = pneg %p300
        $region58: #{_lambda_.1} parent=11 // pred_check_branch
          %376 = sbr.rel (%p374) target = $region60
        $region59: #{_lambda_.1} parent=11 // pred_region
          _
        $region60: #{_lambda_.1} parent=11 // pred_fallthru
          _
      $region12: #{_lambda_.1} parent=5 // pred_fallthru
        _
      %p377 = scmp.lt.s32.totalorder %s22, 2
      // Predicated region
      $region61: #{_lambda_.1} parent=5 // pred_check
        %p378 = pneg %p377
      $region62: #{_lambda_.1} parent=5 // pred_check_branch
        %380 = sbr.rel (%p378) target = $region64
      $region63: #{_lambda_.1} parent=5 // pred_region
        // Predicated region
        $region65: #{_lambda_.1} parent=63 // pred_check
          %p381 = pneg %p42
        $region66: #{_lambda_.1} parent=63 // pred_check_branch
          %383 = sbr.rel (%p381) target = $region68
        $region67: #{_lambda_.1} parent=63 // pred_region
          %s384 = sand.u32 %s32, 1
          %s385 = sand.u32 %s32, 1
          %s386 = smul.addr %s385, 256
          %s387 = scalar_lea.vmem [#allocation6], %s386
          %s388 = smul.u32 2, %s22
          %s389 = smul.addr %s388, 8
          %s390 = scalar_lea.vmem %s0, %s389
          // Predicated region
          $region69: #{_lambda_.1} parent=67 // pred_check
            _
          $region70: #{_lambda_.1} parent=67 // pred_check_branch
            %392 = sbr.rel (0) target = $region72
          $region71: #{_lambda_.1} parent=67 // pred_region
            // Predicated region
            $region73: #{_lambda_.1} parent=71 // pred_check
              _
            $region74: #{_lambda_.1} parent=71 // pred_check_branch
              %394 = sbr.rel (0) target = $region76
            $region75: #{_lambda_.1} parent=71 // pred_region
              // Predicated region
              $region88: #{_lambda_.1} parent=75 // pred_check
                _
              $region89: #{_lambda_.1} parent=75 // pred_check_branch
                %472 = sbr.rel (0) target = $region91
              $region90: #{_lambda_.1} parent=75 // pred_region
                loop: start=0, step=1, limit=1
                $region92: #{_lambda_.1} parent=90 // loop_pre_header
                  _
                $region93: #{_lambda_.1} parent=90 // loop_header
                  %s474 = sphi 0, %s478
                  %p475 = scmp.ge.s32.totalorder %s474, 1
                  %s479 = sphi %s390, %s390
                  %s480 = sphi %s387, %s387
                $region94: #{_lambda_.1} parent=90 // loop_header_branch
                  %477 = sbr.rel (%p475) target = $region98
                $region95: #{_lambda_.1} parent=90 // loop_body
                  %v481 = vld [vmem:[%s479] sm:$0xff]
                  %482 = vst [vmem:[%s480] sm:$0xff] %v481
                  %v483 = vld [vmem:[%s479 + $0x8] sm:$0xff]
                  %484 = vst [vmem:[%s480 + $0x8] sm:$0xff] %v483
                  %v485 = vld [vmem:[%s479 + $0x20] sm:$0xff]
                  %486 = vst [vmem:[%s480 + $0x10] sm:$0xff] %v485
                  %v487 = vld [vmem:[%s479 + $0x28] sm:$0xff]
                  %488 = vst [vmem:[%s480 + $0x18] sm:$0xff] %v487
                  %v489 = vld [vmem:[%s479 + $0x40] sm:$0xff]
                  %490 = vst [vmem:[%s480 + $0x20] sm:$0xff] %v489
                  %v491 = vld [vmem:[%s479 + $0x48] sm:$0xff]
                  %492 = vst [vmem:[%s480 + $0x28] sm:$0xff] %v491
                  %v493 = vld [vmem:[%s479 + $0x60] sm:$0xff]
                  %494 = vst [vmem:[%s480 + $0x30] sm:$0xff] %v493
                  %v495 = vld [vmem:[%s479 + $0x68] sm:$0xff]
                  %496 = vst [vmem:[%s480 + $0x38] sm:$0xff] %v495
                  %v497 = vld [vmem:[%s479 + $0x80] sm:$0xff]
                  %498 = vst [vmem:[%s480 + $0x40] sm:$0xff] %v497
                  %v499 = vld [vmem:[%s479 + $0x88] sm:$0xff]
                  %500 = vst [vmem:[%s480 + $0x48] sm:$0xff] %v499
                  %v501 = vld [vmem:[%s479 + $0xa0] sm:$0xff]
                  %502 = vst [vmem:[%s480 + $0x50] sm:$0xff] %v501
                  %v503 = vld [vmem:[%s479 + $0xa8] sm:$0xff]
                  %504 = vst [vmem:[%s480 + $0x58] sm:$0xff] %v503
                  %v505 = vld [vmem:[%s479 + $0xc0] sm:$0xff]
                  %506 = vst [vmem:[%s480 + $0x60] sm:$0xff] %v505
                  %v507 = vld [vmem:[%s479 + $0xc8] sm:$0xff]
                  %508 = vst [vmem:[%s480 + $0x68] sm:$0xff] %v507
                  %v509 = vld [vmem:[%s479 + $0xe0] sm:$0xff]
                  %510 = vst [vmem:[%s480 + $0x70] sm:$0xff] %v509
                  %v511 = vld [vmem:[%s479 + $0xe8] sm:$0xff]
                  %512 = vst [vmem:[%s480 + $0x78] sm:$0xff] %v511
                  %v513 = vld [vmem:[%s479 + $0x100] sm:$0xff]
                  %514 = vst [vmem:[%s480 + $0x80] sm:$0xff] %v513
                  %v515 = vld [vmem:[%s479 + $0x108] sm:$0xff]
                  %516 = vst [vmem:[%s480 + $0x88] sm:$0xff] %v515
                  %v517 = vld [vmem:[%s479 + $0x120] sm:$0xff]
                  %518 = vst [vmem:[%s480 + $0x90] sm:$0xff] %v517
                  %v519 = vld [vmem:[%s479 + $0x128] sm:$0xff]
                  %520 = vst [vmem:[%s480 + $0x98] sm:$0xff] %v519
                  %v521 = vld [vmem:[%s479 + $0x140] sm:$0xff]
                  %522 = vst [vmem:[%s480 + $0xa0] sm:$0xff] %v521
                  %v523 = vld [vmem:[%s479 + $0x148] sm:$0xff]
                  %524 = vst [vmem:[%s480 + $0xa8] sm:$0xff] %v523
                  %v525 = vld [vmem:[%s479 + $0x160] sm:$0xff]
                  %526 = vst [vmem:[%s480 + $0xb0] sm:$0xff] %v525
                  %v527 = vld [vmem:[%s479 + $0x168] sm:$0xff]
                  %528 = vst [vmem:[%s480 + $0xb8] sm:$0xff] %v527
                  %v529 = vld [vmem:[%s479 + $0x180] sm:$0xff]
                  %530 = vst [vmem:[%s480 + $0xc0] sm:$0xff] %v529
                  %v531 = vld [vmem:[%s479 + $0x188] sm:$0xff]
                  %532 = vst [vmem:[%s480 + $0xc8] sm:$0xff] %v531
                  %v533 = vld [vmem:[%s479 + $0x1a0] sm:$0xff]
                  %534 = vst [vmem:[%s480 + $0xd0] sm:$0xff] %v533
                  %v535 = vld [vmem:[%s479 + $0x1a8] sm:$0xff]
                  %536 = vst [vmem:[%s480 + $0xd8] sm:$0xff] %v535
                  %v537 = vld [vmem:[%s479 + $0x1c0] sm:$0xff]
                  %538 = vst [vmem:[%s480 + $0xe0] sm:$0xff] %v537
                  %v539 = vld [vmem:[%s479 + $0x1c8] sm:$0xff]
                  %540 = vst [vmem:[%s480 + $0xe8] sm:$0xff] %v539
                  %v541 = vld [vmem:[%s479 + $0x1e0] sm:$0xff]
                  %542 = vst [vmem:[%s480 + $0xf0] sm:$0xff] %v541
                  %v543 = vld [vmem:[%s479 + $0x1e8] sm:$0xff]
                  %544 = vst [vmem:[%s480 + $0xf8] sm:$0xff] %v543
                $region96: #{_lambda_.1} parent=90 // loop_footer
                  %s478 = sadd.s32 1, %s474
                $region97: #{_lambda_.1} parent=90 // loop_footer_branch
                  %473 = sbr.rel target = $region93
                $region98: #{_lambda_.1} parent=90 // loop_exit
                  _
              $region91: #{_lambda_.1} parent=75 // pred_fallthru
                _
              // Predicated region
              $region99: #{_lambda_.1} parent=75 // pred_check
                _
              $region100: #{_lambda_.1} parent=75 // pred_check_branch
                %546 = sbr.rel target = $region102
              $region101: #{_lambda_.1} parent=75 // pred_region
                _
              $region102: #{_lambda_.1} parent=75 // pred_fallthru
                _
            $region76: #{_lambda_.1} parent=71 // pred_fallthru
              _
            // Predicated region
            $region77: #{_lambda_.1} parent=71 // pred_check
              _
            $region78: #{_lambda_.1} parent=71 // pred_check_branch
              %396 = sbr.rel target = $region80
            $region79: #{_lambda_.1} parent=71 // pred_region
              %s398 = ssub.s32 256, 1
              loop: start=0, step=1, limit=1
              $region81: #{_lambda_.1} parent=79 // loop_pre_header
                _
              $region82: #{_lambda_.1} parent=79 // loop_header
                %s400 = sphi 0, %s404
                %p401 = scmp.ge.s32.totalorder %s400, 1
                %s405 = sphi %s390, %s390
                %s406 = sphi %s387, %s387
              $region83: #{_lambda_.1} parent=79 // loop_header_branch
                %403 = sbr.rel (%p401) target = $region87
              $region84: #{_lambda_.1} parent=79 // loop_body
                %v407 = vld [vmem:[%s405] sm:%s398]
                %408 = vst [vmem:[%s406] sm:%s398] %v407
                %v409 = vld [vmem:[%s405 + $0x8] sm:%s398]
                %410 = vst [vmem:[%s406 + $0x8] sm:%s398] %v409
                %v411 = vld [vmem:[%s405 + $0x20] sm:%s398]
                %412 = vst [vmem:[%s406 + $0x10] sm:%s398] %v411
                %v413 = vld [vmem:[%s405 + $0x28] sm:%s398]
                %414 = vst [vmem:[%s406 + $0x18] sm:%s398] %v413
                %v415 = vld [vmem:[%s405 + $0x40] sm:%s398]
                %416 = vst [vmem:[%s406 + $0x20] sm:%s398] %v415
                %v417 = vld [vmem:[%s405 + $0x48] sm:%s398]
                %418 = vst [vmem:[%s406 + $0x28] sm:%s398] %v417
                %v419 = vld [vmem:[%s405 + $0x60] sm:%s398]
                %420 = vst [vmem:[%s406 + $0x30] sm:%s398] %v419
                %v421 = vld [vmem:[%s405 + $0x68] sm:%s398]
                %422 = vst [vmem:[%s406 + $0x38] sm:%s398] %v421
                %v423 = vld [vmem:[%s405 + $0x80] sm:%s398]
                %424 = vst [vmem:[%s406 + $0x40] sm:%s398] %v423
                %v425 = vld [vmem:[%s405 + $0x88] sm:%s398]
                %426 = vst [vmem:[%s406 + $0x48] sm:%s398] %v425
                %v427 = vld [vmem:[%s405 + $0xa0] sm:%s398]
                %428 = vst [vmem:[%s406 + $0x50] sm:%s398] %v427
                %v429 = vld [vmem:[%s405 + $0xa8] sm:%s398]
                %430 = vst [vmem:[%s406 + $0x58] sm:%s398] %v429
                %v431 = vld [vmem:[%s405 + $0xc0] sm:%s398]
                %432 = vst [vmem:[%s406 + $0x60] sm:%s398] %v431
                %v433 = vld [vmem:[%s405 + $0xc8] sm:%s398]
                %434 = vst [vmem:[%s406 + $0x68] sm:%s398] %v433
                %v435 = vld [vmem:[%s405 + $0xe0] sm:%s398]
                %436 = vst [vmem:[%s406 + $0x70] sm:%s398] %v435
                %v437 = vld [vmem:[%s405 + $0xe8] sm:%s398]
                %438 = vst [vmem:[%s406 + $0x78] sm:%s398] %v437
                %v439 = vld [vmem:[%s405 + $0x100] sm:%s398]
                %440 = vst [vmem:[%s406 + $0x80] sm:%s398] %v439
                %v441 = vld [vmem:[%s405 + $0x108] sm:%s398]
                %442 = vst [vmem:[%s406 + $0x88] sm:%s398] %v441
                %v443 = vld [vmem:[%s405 + $0x120] sm:%s398]
                %444 = vst [vmem:[%s406 + $0x90] sm:%s398] %v443
                %v445 = vld [vmem:[%s405 + $0x128] sm:%s398]
                %446 = vst [vmem:[%s406 + $0x98] sm:%s398] %v445
                %v447 = vld [vmem:[%s405 + $0x140] sm:%s398]
                %448 = vst [vmem:[%s406 + $0xa0] sm:%s398] %v447
                %v449 = vld [vmem:[%s405 + $0x148] sm:%s398]
                %450 = vst [vmem:[%s406 + $0xa8] sm:%s398] %v449
                %v451 = vld [vmem:[%s405 + $0x160] sm:%s398]
                %452 = vst [vmem:[%s406 + $0xb0] sm:%s398] %v451
                %v453 = vld [vmem:[%s405 + $0x168] sm:%s398]
                %454 = vst [vmem:[%s406 + $0xb8] sm:%s398] %v453
                %v455 = vld [vmem:[%s405 + $0x180] sm:%s398]
                %456 = vst [vmem:[%s406 + $0xc0] sm:%s398] %v455
                %v457 = vld [vmem:[%s405 + $0x188] sm:%s398]
                %458 = vst [vmem:[%s406 + $0xc8] sm:%s398] %v457
                %v459 = vld [vmem:[%s405 + $0x1a0] sm:%s398]
                %460 = vst [vmem:[%s406 + $0xd0] sm:%s398] %v459
                %v461 = vld [vmem:[%s405 + $0x1a8] sm:%s398]
                %462 = vst [vmem:[%s406 + $0xd8] sm:%s398] %v461
                %v463 = vld [vmem:[%s405 + $0x1c0] sm:%s398]
                %464 = vst [vmem:[%s406 + $0xe0] sm:%s398] %v463
                %v465 = vld [vmem:[%s405 + $0x1c8] sm:%s398]
                %466 = vst [vmem:[%s406 + $0xe8] sm:%s398] %v465
                %v467 = vld [vmem:[%s405 + $0x1e0] sm:%s398]
                %468 = vst [vmem:[%s406 + $0xf0] sm:%s398] %v467
                %v469 = vld [vmem:[%s405 + $0x1e8] sm:%s398]
                %470 = vst [vmem:[%s406 + $0xf8] sm:%s398] %v469
              $region85: #{_lambda_.1} parent=79 // loop_footer
                %s404 = sadd.s32 1, %s400
              $region86: #{_lambda_.1} parent=79 // loop_footer_branch
                %399 = sbr.rel target = $region82
              $region87: #{_lambda_.1} parent=79 // loop_exit
                _
            $region80: #{_lambda_.1} parent=71 // pred_fallthru
              _
          $region72: #{_lambda_.1} parent=67 // pred_fallthru
            _
          %547 = vnop
        $region68: #{_lambda_.1} parent=63 // pred_fallthru
          _
      $region64: #{_lambda_.1} parent=5 // pred_fallthru
        _
      %p548 = scmp.le.s32.totalorder 1, %s22
      %p549 = scmp.lt.s32.totalorder %s22, 3
      %p550 = pnand %p548, %p549
      %p551 = pneg %p550
      // Predicated region
      $region103: #{_lambda_.1} parent=5 // pred_check
        _
      $region104: #{_lambda_.1} parent=5 // pred_check_branch
        %553 = sbr.rel (%p550) target = $region106
      $region105: #{_lambda_.1} parent=5 // pred_region
        %s554 = ssub.s32 %s22, 1
        %s555 = sand.u32 %s35, 1
        %s556 = sand.u32 %s35, 1
        %s557 = smul.addr %s556, 256
        %s558 = scalar_lea.vmem [#allocation6], %s557
        // Predicated region
        $region107: #{_lambda_.1} parent=105 // pred_check
          %p559 = pneg %p48
        $region108: #{_lambda_.1} parent=105 // pred_check_branch
          %561 = sbr.rel (%p559) target = $region110
        $region109: #{_lambda_.1} parent=105 // pred_region
          _
        $region110: #{_lambda_.1} parent=105 // pred_fallthru
          _
        %s562 = sand.u32 %s35, 1
        %s563 = sand.u32 %s35, 1
        %s564 = smul.addr %s563, 256
        %s565 = scalar_lea.vmem [#allocation6], %s564
        %p566 = pneg %p48
        %p567 = pneg %p45
        %p568 = pneg %p69
        %p569 = pneg %p66
        %p570 = pneg %p90
        %p571 = pneg %p87
        %p572 = pneg %p111
        %p573 = pneg %p108
        %p574 = pneg %p132
        %p575 = pneg %p129
        %p576 = pneg %p153
        %p577 = pneg %p150
        %p578 = pneg %p174
        %p579 = pneg %p171
        %p580 = pneg %p195
        %p581 = pneg %p192
        %p582 = pneg %p216
        %p583 = pneg %p213
        %p584 = pneg %p237
        %p585 = pneg %p234
        %p586 = pneg %p258
        %p587 = pneg %p255
        %p588 = pneg %p279
        %p589 = pneg %p276
        %p590 = pneg %p300
        %p591 = pneg %p297
        %p592 = pneg %p326
        %p593 = pneg %p323
        %s594 = sand.u32 %s313, 1
        %s595 = scalar_lea.sflag [#allocation8], %s594
        %s596 = sand.u32 %s313, 1
        %s597 = scalar_lea.vmem [#allocation7], %s596
        %s598 = smul.u32 2, %s27
        %vm599 = vcmask 31744
        %600 = vst.msk [vmem:[#allocation2] sm:$0xff] %vm599, 0.0
        %601 = vst.msk [vmem:[#allocation2 + $0x8] sm:$0xff] %vm599, 0.0
        %602 = vst.msk [vmem:[#allocation2 + $0x10] sm:$0xff] %vm599, 0.0
        %603 = vst.msk [vmem:[#allocation2 + $0x18] sm:$0xff] %vm599, 0.0
        %vm604 = vcmask 27648
        %605 = vst.msk [vmem:[#allocation2 + $0x20] sm:$0xf] %vm604, 0.0
        %606 = vst.msk [vmem:[#allocation3] sm:$0xff] %vm599, 0.0
        %607 = vst.msk [vmem:[#allocation3 + $0x8] sm:$0xff] %vm599, 0.0
        %608 = vst.msk [vmem:[#allocation3 + $0x10] sm:$0xff] %vm599, 0.0
        %609 = vst.msk [vmem:[#allocation3 + $0x18] sm:$0xff] %vm599, 0.0
        %610 = vst.msk [vmem:[#allocation3 + $0x20] sm:$0xf] %vm604, 0.0
        %vm611 = vcmask 64512
        %612 = vst.msk [vmem:[#allocation4] sm:$0xff] %vm611, 0.0
        %vm613 = vcmask 57344
        %614 = vst.msk [vmem:[#allocation4 + $0x8] sm:$0x1] %vm613, 0.0
        %615 = vst.msk [vmem:[#allocation5] sm:$0xff] %vm611, 0.0
        %616 = vst.msk [vmem:[#allocation5 + $0x8] sm:$0x1] %vm613, 0.0
        %v617 = vld [vmem:[%s558] sm:$0xff]
        %v618 = vld [vmem:[%s558 + $0x8] sm:$0xff]
        %s619 = scalar_lea.vmem %s558, 16 [#allocation6]
        %v620 = vld [vmem:[%s619] sm:$0xff]
        %v621 = vld [vmem:[%s619 + $0x8] sm:$0xff]
        %v622 = vmax.f32 %v617, %v620
        %v623 = vmax.f32 %v618, %v621
        %v624 = vadd.f32 %v617, %v620
        %v625 = vadd.f32 %v618, %v621
        %s626 = scalar_lea.vmem %s558, 32 [#allocation6]
        %v627 = vld [vmem:[%s626] sm:$0xff]
        %v628 = vld [vmem:[%s626 + $0x8] sm:$0xff]
        %v629 = vmax.f32 %v622, %v627
        %v630 = vmax.f32 %v623, %v628
        %v631 = vadd.f32 %v624, %v627
        %v632 = vadd.f32 %v625, %v628
        %s633 = scalar_lea.vmem %s558, 48 [#allocation6]
        %v634 = vld [vmem:[%s633] sm:$0xff]
        %v635 = vld [vmem:[%s633 + $0x8] sm:$0xff]
        %v636 = vmax.f32 %v629, %v634
        %v637 = vmax.f32 %v630, %v635
        %v638 = vadd.f32 %v631, %v634
        %v639 = vadd.f32 %v632, %v635
        %s640 = scalar_lea.vmem %s558, 64 [#allocation6]
        %v641 = vld [vmem:[%s640] sm:$0xff]
        %v642 = vld [vmem:[%s640 + $0x8] sm:$0xff]
        %v643 = vmax.f32 %v636, %v641
        %v644 = vmax.f32 %v637, %v642
        %v645 = vadd.f32 %v638, %v641
        %v646 = vadd.f32 %v639, %v642
        %s647 = scalar_lea.vmem %s558, 80 [#allocation6]
        %v648 = vld [vmem:[%s647] sm:$0xff]
        %v649 = vld [vmem:[%s647 + $0x8] sm:$0xff]
        %v650 = vmax.f32 %v643, %v648
        %v651 = vmax.f32 %v644, %v649
        %v652 = vadd.f32 %v645, %v648
        %v653 = vadd.f32 %v646, %v649
        %s654 = scalar_lea.vmem %s558, 96 [#allocation6]
        %v655 = vld [vmem:[%s654] sm:$0xff]
        %v656 = vld [vmem:[%s654 + $0x8] sm:$0xff]
        %v657 = vmax.f32 %v650, %v655
        %v658 = vmax.f32 %v651, %v656
        %v659 = vadd.f32 %v652, %v655
        %v660 = vadd.f32 %v653, %v656
        %s661 = scalar_lea.vmem %s558, 112 [#allocation6]
        %v662 = vld [vmem:[%s661] sm:$0xff]
        %v663 = vld [vmem:[%s661 + $0x8] sm:$0xff]
        %v664 = vmax.f32 %v657, %v662
        %v665 = vmax.f32 %v658, %v663
        %v666 = vadd.f32 %v659, %v662
        %v667 = vadd.f32 %v660, %v663
        %s668 = scalar_lea.vmem %s558, 128 [#allocation6]
        %v669 = vld [vmem:[%s668] sm:$0xff]
        %v670 = vld [vmem:[%s668 + $0x8] sm:$0xff]
        %v671 = vmax.f32 %v664, %v669
        %v672 = vmax.f32 %v665, %v670
        %v673 = vadd.f32 %v666, %v669
        %v674 = vadd.f32 %v667, %v670
        %s675 = scalar_lea.vmem %s558, 144 [#allocation6]
        %v676 = vld [vmem:[%s675] sm:$0xff]
        %v677 = vld [vmem:[%s675 + $0x8] sm:$0xff]
        %v678 = vmax.f32 %v671, %v676
        %v679 = vmax.f32 %v672, %v677
        %v680 = vadd.f32 %v673, %v676
        %v681 = vadd.f32 %v674, %v677
        %s682 = scalar_lea.vmem %s558, 160 [#allocation6]
        %v683 = vld [vmem:[%s682] sm:$0xff]
        %v684 = vld [vmem:[%s682 + $0x8] sm:$0xff]
        %v685 = vmax.f32 %v678, %v683
        %v686 = vmax.f32 %v679, %v684
        %v687 = vadd.f32 %v680, %v683
        %v688 = vadd.f32 %v681, %v684
        %s689 = scalar_lea.vmem %s558, 176 [#allocation6]
        %v690 = vld [vmem:[%s689] sm:$0xff]
        %v691 = vld [vmem:[%s689 + $0x8] sm:$0xff]
        %v692 = vmax.f32 %v685, %v690
        %v693 = vmax.f32 %v686, %v691
        %v694 = vadd.f32 %v687, %v690
        %v695 = vadd.f32 %v688, %v691
        %s696 = scalar_lea.vmem %s558, 192 [#allocation6]
        %v697 = vld [vmem:[%s696] sm:$0xff]
        %v698 = vld [vmem:[%s696 + $0x8] sm:$0xff]
        %v699 = vmax.f32 %v692, %v697
        %v700 = vmax.f32 %v693, %v698
        %v701 = vadd.f32 %v694, %v697
        %v702 = vadd.f32 %v695, %v698
        %s703 = scalar_lea.vmem %s558, 208 [#allocation6]
        %v704 = vld [vmem:[%s703] sm:$0xff]
        %v705 = vld [vmem:[%s703 + $0x8] sm:$0xff]
        %v706 = vmax.f32 %v699, %v704
        %v707 = vmax.f32 %v700, %v705
        %v708 = vadd.f32 %v701, %v704
        %v709 = vadd.f32 %v702, %v705
        %s710 = scalar_lea.vmem %s558, 224 [#allocation6]
        %v711 = vld [vmem:[%s710] sm:$0xff]
        %v712 = vld [vmem:[%s710 + $0x8] sm:$0xff]
        %v713 = vmax.f32 %v706, %v711
        %v714 = vmax.f32 %v707, %v712
        %v715 = vadd.f32 %v708, %v711
        %v716 = vadd.f32 %v709, %v712
        %s717 = scalar_lea.vmem %s558, 240 [#allocation6]
        %v718 = vld [vmem:[%s717] sm:$0xff]
        %v719 = vld [vmem:[%s717 + $0x8] sm:$0xff]
        %v720 = vmax.f32 %v713, %v718
        %v721 = vmax.f32 %v714, %v719
        %v722 = vadd.f32 %v715, %v718
        %v723 = vadd.f32 %v716, %v719
        %v724 = vmul.f32 %v722, 0.0625
        %v725 = vmul.f32 %v723, 0.0625
        %726 = vst.msk [vmem:[#allocation2 + $0x7] sm:$0xf] %vm604, %v720
        %727 = vst.msk [vmem:[#allocation3 + $0x7] sm:$0xf] %vm604, %v724
        %vm728 = vcmask 31748
        %729 = vst.msk [vmem:[#allocation2 + $0x9] sm:$0xf0] %vm728, %v720
        %730 = vst.msk [vmem:[#allocation3 + $0x9] sm:$0xf0] %vm728, %v724
        %731 = vst.msk [vmem:[#allocation2 + $0x13] sm:$0xf] %vm604, %v721
        %732 = vst.msk [vmem:[#allocation3 + $0x13] sm:$0xf] %vm604, %v725
        %733 = vst.msk [vmem:[#allocation2 + $0x15] sm:$0xf0] %vm728, %v721
        %734 = vst.msk [vmem:[#allocation3 + $0x15] sm:$0xf0] %vm728, %v725
        %v735 = vld [vmem:[#allocation2] sm:$0xf]
        %v736 = vld [vmem:[#allocation2 + $0x6] sm:$0xf]
        %v737 = vld [vmem:[#allocation2 + $0xc] sm:$0xf]
        %v738 = vld [vmem:[#allocation2 + $0x12] sm:$0xf]
        %v740 = vrot.slane %v736, 4
        %v743 = vrot.slane %v738, 4
        %vm745 = vcmask 1043456
        %v746 = vsel %vm745, %v735, %v740
        %v747 = vsel %vm745, %v737, %v743
        %v748 = vld [vmem:[#allocation2 + $0x1] sm:$0xf]
        %v749 = vld [vmem:[#allocation2 + $0x7] sm:$0xf]
        %v750 = vld [vmem:[#allocation2 + $0xd] sm:$0xf]
        %v751 = vld [vmem:[#allocation2 + $0x13] sm:$0xf]
        %v753 = vrot.slane %v749, 4
        %v756 = vrot.slane %v751, 4
        %v758 = vsel %vm745, %v748, %v753
        %v759 = vsel %vm745, %v750, %v756
        %v760 = vld [vmem:[#allocation2 + $0x2] sm:$0xf]
        %v761 = vld [vmem:[#allocation2 + $0x8] sm:$0xf]
        %v762 = vld [vmem:[#allocation2 + $0xe] sm:$0xf]
        %v763 = vld [vmem:[#allocation2 + $0x14] sm:$0xf]
        %v765 = vrot.slane %v761, 4
        %v768 = vrot.slane %v763, 4
        %v770 = vsel %vm745, %v760, %v765
        %v771 = vsel %vm745, %v762, %v768
        %v772 = vld [vmem:[#allocation2 + $0x18] sm:$0xf]
        %v774 = vrot.slane %v737, 4
        %v777 = vrot.slane %v772, 4
        %v779 = vsel %vm745, %v736, %v774
        %v780 = vsel %vm745, %v738, %v777
        %v781 = vld [vmem:[#allocation2 + $0x19] sm:$0xf]
        %v783 = vrot.slane %v750, 4
        %v786 = vrot.slane %v781, 4
        %v788 = vsel %vm745, %v749, %v783
        %v789 = vsel %vm745, %v751, %v786
        %v790 = vld [vmem:[#allocation2 + $0x1a] sm:$0xf]
        %v792 = vrot.slane %v762, 4
        %v795 = vrot.slane %v790, 4
        %v797 = vsel %vm745, %v761, %v792
        %v798 = vsel %vm745, %v763, %v795
        %v799 = vld [vmem:[#allocation2 + $0x1e] sm:$0xf]
        %v801 = vrot.slane %v799, 4
        %v803 = vsel %vm745, %v772, %v801
        %v804 = vld [vmem:[#allocation2 + $0x1f] sm:$0xf]
        %v806 = vrot.slane %v804, 4
        %v808 = vsel %vm745, %v781, %v806
        %v809 = vld [vmem:[#allocation2 + $0x20] sm:$0xf]
        %v811 = vrot.slane %v809, 4
        %v813 = vsel %vm745, %v790, %v811
        %816 = vrot.lane.b32.xlu0 %v758, 4
        %v817 = vpop.permute.xlu0 %816
        %818 = vrot.lane.b32.xlu0 %v759, 4
        %v819 = vpop.permute.xlu0 %818
        %824 = vrot.lane.b32.xlu0 %v770, 8
        %v825 = vpop.permute.xlu0 %824
        %826 = vrot.lane.b32.xlu0 %v771, 8
        %v827 = vpop.permute.xlu0 %826
        %832 = vrot.lane.b32.xlu0 %v779, 12
        %v833 = vpop.permute.xlu0 %832
        %834 = vrot.lane.b32.xlu0 %v780, 12
        %v835 = vpop.permute.xlu0 %834
        %840 = vrot.lane.b32.xlu0 %v788, 16
        %v841 = vpop.permute.xlu0 %840
        %842 = vrot.lane.b32.xlu0 %v789, 16
        %v843 = vpop.permute.xlu0 %842
        %848 = vrot.lane.b32.xlu0 %v797, 20
        %v849 = vpop.permute.xlu0 %848
        %850 = vrot.lane.b32.xlu0 %v798, 20
        %v851 = vpop.permute.xlu0 %850
        %856 = vrot.lane.b32.xlu0 %v747, 24
        %v857 = vpop.permute.xlu0 %856
        %858 = vrot.lane.b32.xlu0 %v803, 24
        %v859 = vpop.permute.xlu0 %858
        %863 = vrot.lane.b32.xlu0 %v759, 28
        %v864 = vpop.permute.xlu0 %863
        %865 = vrot.lane.b32.xlu0 %v808, 28
        %v866 = vpop.permute.xlu0 %865
        %870 = vrot.lane.b32.xlu0 %v771, 32
        %v871 = vpop.permute.xlu0 %870
        %872 = vrot.lane.b32.xlu0 %v813, 32
        %v873 = vpop.permute.xlu0 %872
        %v876 = vsel %vm599, %v746, %v817
        %v877 = vsel %vm599, %v747, %v819
        %v878 = vsel %vm611, %v876, %v825
        %v879 = vsel %vm611, %v877, %v827
        %vm880 = vcmask 97280
        %v881 = vsel %vm880, %v878, %v833
        %v882 = vsel %vm880, %v879, %v835
        %vm883 = vcmask 130048
        %v884 = vsel %vm883, %v881, %v841
        %v885 = vsel %vm883, %v882, %v843
        %vm886 = vcmask 162816
        %v887 = vsel %vm886, %v884, %v849
        %v888 = vsel %vm886, %v885, %v851
        %vm889 = vcmask 195584
        %v890 = vsel %vm889, %v887, %v857
        %v891 = vsel %vm889, %v888, %v859
        %vm892 = vcmask 228352
        %v893 = vsel %vm892, %v890, %v864
        %v894 = vsel %vm892, %v891, %v866
        %vm895 = vcmask 261120
        %v896 = vsel %vm895, %v893, %v871
        %v897 = vsel %vm895, %v894, %v873
        %v898 = vld [vmem:[%s1] sm:$0xff]
        %v899 = vld [vmem:[%s1 + $0x8] sm:$0xff]
        %v900 = vld [vmem:[%s1 + $0x10] sm:$0xff]
        %v901 = vld [vmem:[%s1 + $0x18] sm:$0xff]
        %v902 = vld [vmem:[%s1 + $0x20] sm:$0xf]
        %v903 = vld [vmem:[%s2] sm:$0x1]
        %v905 = vlaneseq
        %v906 = vshrl.u32 %v905, 7
        %v907 = vsub.s32 0, %v906
        %v908 = vrot.slane %v903, %v907
        %vm910 = vcmask 293888
        %v912 = vsel %vm910, %v896, 0
        %v915 = vsel %vm910, %v897, 0
        %v918 = vsel %vm745, %v902, 0
        %920 = vmatprep.subr.mxu0 0.0
        %921 = vmatpush1.msra.mxu0 0.0
        %922 = vmatprep.subr.mxu0 0.0
        %923 = vmatpush1.msra.mxu0 0.0
        %924 = vmatprep.subr.mxu0 0.0
        %925 = vmatpush1.msra.mxu0 0.0
        %926 = vmatprep.subr.mxu0 0.0
        %927 = vmatpush1.msra.mxu0 0.0
        %928 = vmatprep.subr.mxu0 0.0
        %929 = vmatpush1.msra.mxu0 0.0
        %930 = vmatprep.subr.mxu0 0.0
        %931 = vmatpush1.msra.mxu0 0.0
        %932 = vmatprep.subr.mxu0 0.0
        %933 = vmatpush1.msra.mxu0 0.0
        %934 = vmatprep.subr.mxu0 0.0
        %935 = vmatpush1.msra.mxu0 0.0
        %936 = vmatprep.subr.mxu0 0.0
        %937 = vmatpush1.msra.mxu0 0.0
        %938 = vmatprep.subr.mxu0 0.0
        %939 = vmatpush1.msra.mxu0 0.0
        %940 = vmatprep.subr.mxu0 0.0
        %941 = vmatpush1.msra.mxu0 0.0
        %942 = vmatprep.subr.mxu0 0.0
        %943 = vmatpush1.msra.mxu0 %v918
        %944 = vmatprep.subr.mxu0 0.0
        %945 = vmatpush1.msra.mxu0 %v901
        %946 = vmatprep.subr.mxu0 0.0
        %947 = vmatpush1.msra.mxu0 %v900
        %948 = vmatprep.subr.mxu0 0.0
        %949 = vmatpush1.msra.mxu0 %v899
        %950 = vmatprep.subr.mxu0 0.0
        %951 = vmatpush1.msra.mxu0 %v898
        %952 = vmatprep.subr.mxu0 0.0
        %953 = vmatpush2.msra.mxu0 0.0
        %954 = vmatprep.subr.mxu0 0.0
        %955 = vmatpush2.msra.mxu0 0.0
        %956 = vmatprep.subr.mxu0 0.0
        %957 = vmatpush2.msra.mxu0 0.0
        %958 = vmatprep.subr.mxu0 0.0
        %959 = vmatpush2.msra.mxu0 0.0
        %960 = vmatprep.subr.mxu0 0.0
        %961 = vmatpush2.msra.mxu0 0.0
        %962 = vmatprep.subr.mxu0 0.0
        %963 = vmatpush2.msra.mxu0 0.0
        %964 = vmatprep.subr.mxu0 0.0
        %965 = vmatpush2.msra.mxu0 0.0
        %966 = vmatprep.subr.mxu0 0.0
        %967 = vmatpush2.msra.mxu0 0.0
        %968 = vmatprep.subr.mxu0 0.0
        %969 = vmatpush2.msra.mxu0 0.0
        %970 = vmatprep.subr.mxu0 0.0
        %971 = vmatpush2.msra.mxu0 0.0
        %972 = vmatprep.subr.mxu0 0.0
        %973 = vmatpush2.msra.mxu0 0.0
        %974 = vmatprep.subr.mxu0 0.0
        %975 = vmatpush2.msra.mxu0 0.0
        %976 = vmatprep.subr.mxu0 0.0
        %977 = vmatpush2.msra.mxu0 0.0
        %978 = vmatprep.subr.mxu0 0.0
        %979 = vmatpush2.msra.mxu0 0.0
        %980 = vmatprep.subr.mxu0 0.0
        %981 = vmatpush2.msra.mxu0 0.0
        %982 = vmatprep.subr.mxu0 0.0
        %983 = vmatpush2.msra.mxu0 0.0
        %984 = vmatprep.mubr.f32.mxu0 0.0
        %985 = vmatmul.mubr.f32.gmra.mxu0 %v912
        %v986 = vpop.f32.mrf.mxu0
        %v987 = vadd.f32 %v908, %v986
        %v988 = vpop.f32.mrf.mxu0
        %989 = vmatprep.mubr.f32.mxu0 0.0
        %990 = vmatmul.mubr.f32.gmra.mxu0 %v915
        %v991 = vpop.f32.mrf.mxu0
        %v992 = vadd.f32 %v908, %v991
        %v993 = vpop.f32.mrf.mxu0
        %994 = vdwg.mxu0
        %vm995 = vcmp.gt.f32.partialorder %v987, 0.0
        %vm996 = vcmp.gt.f32.partialorder %v992, 0.0
        %v997 = vmul.f32 %v987, 0.01
        %v998 = vmul.f32 %v992, 0.01
        %v999 = vsel %vm995, %v987, %v997
        %v1000 = vsel %vm996, %v992, %v998
        %v1001 = vld [vmem:[#allocation3] sm:$0xf]
        %v1002 = vld [vmem:[#allocation3 + $0x6] sm:$0xf]
        %v1003 = vld [vmem:[#allocation3 + $0xc] sm:$0xf]
        %v1004 = vld [vmem:[#allocation3 + $0x12] sm:$0xf]
        %v1006 = vrot.slane %v1002, 4
        %v1009 = vrot.slane %v1004, 4
        %v1011 = vsel %vm745, %v1001, %v1006
        %v1012 = vsel %vm745, %v1003, %v1009
        %v1013 = vld [vmem:[#allocation3 + $0x1] sm:$0xf]
        %v1014 = vld [vmem:[#allocation3 + $0x7] sm:$0xf]
        %v1015 = vld [vmem:[#allocation3 + $0xd] sm:$0xf]
        %v1016 = vld [vmem:[#allocation3 + $0x13] sm:$0xf]
        %v1018 = vrot.slane %v1014, 4
        %v1021 = vrot.slane %v1016, 4
        %v1023 = vsel %vm745, %v1013, %v1018
        %v1024 = vsel %vm745, %v1015, %v1021
        %v1025 = vld [vmem:[#allocation3 + $0x2] sm:$0xf]
        %v1026 = vld [vmem:[#allocation3 + $0x8] sm:$0xf]
        %v1027 = vld [vmem:[#allocation3 + $0xe] sm:$0xf]
        %v1028 = vld [vmem:[#allocation3 + $0x14] sm:$0xf]
        %v1030 = vrot.slane %v1026, 4
        %v1033 = vrot.slane %v1028, 4
        %v1035 = vsel %vm745, %v1025, %v1030
        %v1036 = vsel %vm745, %v1027, %v1033
        %v1037 = vld [vmem:[#allocation3 + $0x18] sm:$0xf]
        %v1039 = vrot.slane %v1003, 4
        %v1042 = vrot.slane %v1037, 4
        %v1044 = vsel %vm745, %v1002, %v1039
        %v1045 = vsel %vm745, %v1004, %v1042
        %v1046 = vld [vmem:[#allocation3 + $0x19] sm:$0xf]
        %v1048 = vrot.slane %v1015, 4
        %v1051 = vrot.slane %v1046, 4
        %v1053 = vsel %vm745, %v1014, %v1048
        %v1054 = vsel %vm745, %v1016, %v1051
        %v1055 = vld [vmem:[#allocation3 + $0x1a] sm:$0xf]
        %v1057 = vrot.slane %v1027, 4
        %v1060 = vrot.slane %v1055, 4
        %v1062 = vsel %vm745, %v1026, %v1057
        %v1063 = vsel %vm745, %v1028, %v1060
        %v1064 = vld [vmem:[#allocation3 + $0x1e] sm:$0xf]
        %v1066 = vrot.slane %v1064, 4
        %v1068 = vsel %vm745, %v1037, %v1066
        %v1069 = vld [vmem:[#allocation3 + $0x1f] sm:$0xf]
        %v1071 = vrot.slane %v1069, 4
        %v1073 = vsel %vm745, %v1046, %v1071
        %v1074 = vld [vmem:[#allocation3 + $0x20] sm:$0xf]
        %v1076 = vrot.slane %v1074, 4
        %v1078 = vsel %vm745, %v1055, %v1076
        %1081 = vrot.lane.b32.xlu0 %v1023, 4
        %v1082 = vpop.permute.xlu0 %1081
        %1083 = vrot.lane.b32.xlu0 %v1024, 4
        %v1084 = vpop.permute.xlu0 %1083
        %1089 = vrot.lane.b32.xlu0 %v1035, 8
        %v1090 = vpop.permute.xlu0 %1089
        %1091 = vrot.lane.b32.xlu0 %v1036, 8
        %v1092 = vpop.permute.xlu0 %1091
        %1097 = vrot.lane.b32.xlu0 %v1044, 12
        %v1098 = vpop.permute.xlu0 %1097
        %1099 = vrot.lane.b32.xlu0 %v1045, 12
        %v1100 = vpop.permute.xlu0 %1099
        %1105 = vrot.lane.b32.xlu0 %v1053, 16
        %v1106 = vpop.permute.xlu0 %1105
        %1107 = vrot.lane.b32.xlu0 %v1054, 16
        %v1108 = vpop.permute.xlu0 %1107
        %1113 = vrot.lane.b32.xlu0 %v1062, 20
        %v1114 = vpop.permute.xlu0 %1113
        %1115 = vrot.lane.b32.xlu0 %v1063, 20
        %v1116 = vpop.permute.xlu0 %1115
        %1121 = vrot.lane.b32.xlu0 %v1012, 24
        %v1122 = vpop.permute.xlu0 %1121
        %1123 = vrot.lane.b32.xlu0 %v1068, 24
        %v1124 = vpop.permute.xlu0 %1123
        %1128 = vrot.lane.b32.xlu0 %v1024, 28
        %v1129 = vpop.permute.xlu0 %1128
        %1130 = vrot.lane.b32.xlu0 %v1073, 28
        %v1131 = vpop.permute.xlu0 %1130
        %1135 = vrot.lane.b32.xlu0 %v1036, 32
        %v1136 = vpop.permute.xlu0 %1135
        %1137 = vrot.lane.b32.xlu0 %v1078, 32
        %v1138 = vpop.permute.xlu0 %1137
        %v1141 = vsel %vm599, %v1011, %v1082
        %v1142 = vsel %vm599, %v1012, %v1084
        %v1143 = vsel %vm611, %v1141, %v1090
        %v1144 = vsel %vm611, %v1142, %v1092
        %v1145 = vsel %vm880, %v1143, %v1098
        %v1146 = vsel %vm880, %v1144, %v1100
        %v1147 = vsel %vm883, %v1145, %v1106
        %v1148 = vsel %vm883, %v1146, %v1108
        %v1149 = vsel %vm886, %v1147, %v1114
        %v1150 = vsel %vm886, %v1148, %v1116
        %v1151 = vsel %vm889, %v1149, %v1122
        %v1152 = vsel %vm889, %v1150, %v1124
        %v1153 = vsel %vm892, %v1151, %v1129
        %v1154 = vsel %vm892, %v1152, %v1131
        %v1155 = vsel %vm895, %v1153, %v1136
        %v1156 = vsel %vm895, %v1154, %v1138
        %v1157 = vld [vmem:[%s3] sm:$0xff]
        %v1158 = vld [vmem:[%s3 + $0x8] sm:$0xff]
        %v1159 = vld [vmem:[%s3 + $0x10] sm:$0xff]
        %v1160 = vld [vmem:[%s3 + $0x18] sm:$0xff]
        %v1161 = vld [vmem:[%s3 + $0x20] sm:$0xf]
        %v1162 = vld [vmem:[%s4] sm:$0x1]
        %v1164 = vlaneseq
        %v1165 = vshrl.u32 %v1164, 7
        %v1166 = vsub.s32 0, %v1165
        %v1167 = vrot.slane %v1162, %v1166
        %v1170 = vsel %vm910, %v1155, 0
        %v1173 = vsel %vm910, %v1156, 0
        %v1176 = vsel %vm745, %v1161, 0
        %1178 = vmatprep.subr.mxu0 0.0
        %1179 = vmatpush1.msra.mxu0 0.0
        %1180 = vmatprep.subr.mxu0 0.0
        %1181 = vmatpush1.msra.mxu0 0.0
        %1182 = vmatprep.subr.mxu0 0.0
        %1183 = vmatpush1.msra.mxu0 0.0
        %1184 = vmatprep.subr.mxu0 0.0
        %1185 = vmatpush1.msra.mxu0 0.0
        %1186 = vmatprep.subr.mxu0 0.0
        %1187 = vmatpush1.msra.mxu0 0.0
        %1188 = vmatprep.subr.mxu0 0.0
        %1189 = vmatpush1.msra.mxu0 0.0
        %1190 = vmatprep.subr.mxu0 0.0
        %1191 = vmatpush1.msra.mxu0 0.0
        %1192 = vmatprep.subr.mxu0 0.0
        %1193 = vmatpush1.msra.mxu0 0.0
        %1194 = vmatprep.subr.mxu0 0.0
        %1195 = vmatpush1.msra.mxu0 0.0
        %1196 = vmatprep.subr.mxu0 0.0
        %1197 = vmatpush1.msra.mxu0 0.0
        %1198 = vmatprep.subr.mxu0 0.0
        %1199 = vmatpush1.msra.mxu0 0.0
        %1200 = vmatprep.subr.mxu0 0.0
        %1201 = vmatpush1.msra.mxu0 %v1176
        %1202 = vmatprep.subr.mxu0 0.0
        %1203 = vmatpush1.msra.mxu0 %v1160
        %1204 = vmatprep.subr.mxu0 0.0
        %1205 = vmatpush1.msra.mxu0 %v1159
        %1206 = vmatprep.subr.mxu0 0.0
        %1207 = vmatpush1.msra.mxu0 %v1158
        %1208 = vmatprep.subr.mxu0 0.0
        %1209 = vmatpush1.msra.mxu0 %v1157
        %1210 = vmatprep.subr.mxu0 0.0
        %1211 = vmatpush2.msra.mxu0 0.0
        %1212 = vmatprep.subr.mxu0 0.0
        %1213 = vmatpush2.msra.mxu0 0.0
        %1214 = vmatprep.subr.mxu0 0.0
        %1215 = vmatpush2.msra.mxu0 0.0
        %1216 = vmatprep.subr.mxu0 0.0
        %1217 = vmatpush2.msra.mxu0 0.0
        %1218 = vmatprep.subr.mxu0 0.0
        %1219 = vmatpush2.msra.mxu0 0.0
        %1220 = vmatprep.subr.mxu0 0.0
        %1221 = vmatpush2.msra.mxu0 0.0
        %1222 = vmatprep.subr.mxu0 0.0
        %1223 = vmatpush2.msra.mxu0 0.0
        %1224 = vmatprep.subr.mxu0 0.0
        %1225 = vmatpush2.msra.mxu0 0.0
        %1226 = vmatprep.subr.mxu0 0.0
        %1227 = vmatpush2.msra.mxu0 0.0
        %1228 = vmatprep.subr.mxu0 0.0
        %1229 = vmatpush2.msra.mxu0 0.0
        %1230 = vmatprep.subr.mxu0 0.0
        %1231 = vmatpush2.msra.mxu0 0.0
        %1232 = vmatprep.subr.mxu0 0.0
        %1233 = vmatpush2.msra.mxu0 0.0
        %1234 = vmatprep.subr.mxu0 0.0
        %1235 = vmatpush2.msra.mxu0 0.0
        %1236 = vmatprep.subr.mxu0 0.0
        %1237 = vmatpush2.msra.mxu0 0.0
        %1238 = vmatprep.subr.mxu0 0.0
        %1239 = vmatpush2.msra.mxu0 0.0
        %1240 = vmatprep.subr.mxu0 0.0
        %1241 = vmatpush2.msra.mxu0 0.0
        %1242 = vmatprep.mubr.f32.mxu0 0.0
        %1243 = vmatmul.mubr.f32.gmra.mxu0 %v1170
        %v1244 = vpop.f32.mrf.mxu0
        %v1245 = vadd.f32 %v1167, %v1244
        %v1246 = vpop.f32.mrf.mxu0
        %1247 = vmatprep.mubr.f32.mxu0 0.0
        %1248 = vmatmul.mubr.f32.gmra.mxu0 %v1173
        %v1249 = vpop.f32.mrf.mxu0
        %v1250 = vadd.f32 %v1167, %v1249
        %v1251 = vpop.f32.mrf.mxu0
        %1252 = vdwg.mxu0
        %vm1253 = vcmp.gt.f32.partialorder %v1245, 0.0
        %vm1254 = vcmp.gt.f32.partialorder %v1250, 0.0
        %v1255 = vmul.f32 %v1245, 0.01
        %v1256 = vmul.f32 %v1250, 0.01
        %v1257 = vsel %vm1253, %v1245, %v1255
        %v1258 = vsel %vm1254, %v1250, %v1256
        %v1260 = vrot.slane %v999, 4
        %v1262 = vmax.f32 %v999, %v1260
        %v1263 = vmax.f32 %v1262, %v1000
        %v1265 = vrot.slane %v1000, 4
        %v1267 = vmax.f32 %v1263, %v1265
        %vm1268 = vcmask 60416
        %v1269 = vsel %vm1268, %v1267, -inf
        %v1270 = vrot.slane %v1269, 4
        %v1271 = vmax.f32 %v1269, %v1270
        %v1272 = vrot.slane %v1271, 2
        %v1273 = vmax.f32 %v1271, %v1272
        %v1274 = vrot.slane %v1273, 1
        %v1275 = vmax.f32 %v1273, %v1274
        %1276 = vst.msk [vmem:[#allocation4 + $0x4] sm:$0x1] %vm613, %v1275
        %v1278 = vrot.slane %v1257, 4
        %v1280 = vadd.f32 %v1257, %v1278
        %v1281 = vadd.f32 %v1280, %v1258
        %v1283 = vrot.slane %v1258, 4
        %v1285 = vadd.f32 %v1281, %v1283
        %v1286 = vsel %vm1268, %v1285, 0.0
        %v1287 = vrot.slane %v1286, 4
        %v1288 = vadd.f32 %v1286, %v1287
        %v1289 = vrot.slane %v1288, 2
        %v1290 = vadd.f32 %v1288, %v1289
        %v1291 = vrot.slane %v1290, 1
        %v1292 = vadd.f32 %v1290, %v1291
        %v1293 = vmul.f32 %v1292, 0.0625
        %1294 = vst.msk [vmem:[#allocation5 + $0x4] sm:$0x1] %vm613, %v1293
        %v1295 = vld [vmem:[#allocation4] sm:$0x1]
        %v1296 = vld [vmem:[#allocation4 + $0x1] sm:$0x1]
        %v1297 = vld [vmem:[#allocation4 + $0x2] sm:$0x1]
        %v1298 = vld [vmem:[#allocation4 + $0x3] sm:$0x1]
        %v1299 = vld [vmem:[#allocation4 + $0x4] sm:$0x1]
        %v1300 = vld [vmem:[#allocation4 + $0x5] sm:$0x1]
        %v1301 = vld [vmem:[#allocation4 + $0x6] sm:$0x1]
        %v1302 = vld [vmem:[#allocation4 + $0x7] sm:$0x1]
        %v1303 = vld [vmem:[#allocation4 + $0x8] sm:$0x1]
        %1305 = vrot.lane.b32.xlu0 %v1296, 8
        %v1306 = vpop.permute.xlu0 %1305
        %1309 = vrot.lane.b32.xlu0 %v1297, 16
        %v1310 = vpop.permute.xlu0 %1309
        %1313 = vrot.lane.b32.xlu0 %v1298, 24
        %v1314 = vpop.permute.xlu0 %1313
        %1317 = vrot.lane.b32.xlu0 %v1299, 32
        %v1318 = vpop.permute.xlu0 %1317
        %1321 = vrot.lane.b32.xlu0 %v1300, 40
        %v1322 = vpop.permute.xlu0 %1321
        %1325 = vrot.lane.b32.xlu0 %v1301, 48
        %v1326 = vpop.permute.xlu0 %1325
        %1329 = vrot.lane.b32.xlu0 %v1302, 56
        %v1330 = vpop.permute.xlu0 %1329
        %1333 = vrot.lane.b32.xlu0 %v1303, 64
        %v1334 = vpop.permute.xlu0 %1333
        %v1336 = vsel %vm611, %v1295, %v1306
        %v1337 = vsel %vm883, %v1336, %v1310
        %v1338 = vsel %vm889, %v1337, %v1314
        %v1339 = vsel %vm895, %v1338, %v1318
        %vm1340 = vcmask 326656
        %v1341 = vsel %vm1340, %v1339, %v1322
        %vm1342 = vcmask 392192
        %v1343 = vsel %vm1342, %v1341, %v1326
        %vm1344 = vcmask 457728
        %v1345 = vsel %vm1344, %v1343, %v1330
        %vm1346 = vcmask 523264
        %v1347 = vsel %vm1346, %v1345, %v1334
        %v1348 = vld [vmem:[%s5] sm:$0xff]
        %v1349 = vld [vmem:[%s5 + $0x8] sm:$0xff]
        %v1350 = vld [vmem:[%s5 + $0x10] sm:$0xff]
        %v1351 = vld [vmem:[%s5 + $0x18] sm:$0xff]
        %v1352 = vld [vmem:[%s5 + $0x20] sm:$0xff]
        %v1353 = vld [vmem:[%s5 + $0x28] sm:$0xff]
        %v1354 = vld [vmem:[%s5 + $0x30] sm:$0xff]
        %v1355 = vld [vmem:[%s5 + $0x38] sm:$0xff]
        %v1356 = vld [vmem:[%s5 + $0x40] sm:$0xff]
        %v1357 = vld [vmem:[%s6] sm:$0x1]
        %vm1358 = vcmask 588800
        %v1360 = vsel %vm1358, %v1347, 0
        %1362 = vmatprep.subr.mxu0 0.0
        %1363 = vmatpush1.msra.mxu0 0.0
        %1364 = vmatprep.subr.mxu0 0.0
        %1365 = vmatpush1.msra.mxu0 0.0
        %1366 = vmatprep.subr.mxu0 0.0
        %1367 = vmatpush1.msra.mxu0 0.0
        %1368 = vmatprep.subr.mxu0 0.0
        %1369 = vmatpush1.msra.mxu0 0.0
        %1370 = vmatprep.subr.mxu0 0.0
        %1371 = vmatpush1.msra.mxu0 0.0
        %1372 = vmatprep.subr.mxu0 0.0
        %1373 = vmatpush1.msra.mxu0 0.0
        %1374 = vmatprep.subr.mxu0 0.0
        %1375 = vmatpush1.msra.mxu0 0.0
        %1376 = vmatprep.subr.mxu0 0.0
        %1377 = vmatpush1.msra.mxu0 %v1356
        %1378 = vmatprep.subr.mxu0 0.0
        %1379 = vmatpush1.msra.mxu0 %v1355
        %1380 = vmatprep.subr.mxu0 0.0
        %1381 = vmatpush1.msra.mxu0 %v1354
        %1382 = vmatprep.subr.mxu0 0.0
        %1383 = vmatpush1.msra.mxu0 %v1353
        %1384 = vmatprep.subr.mxu0 0.0
        %1385 = vmatpush1.msra.mxu0 %v1352
        %1386 = vmatprep.subr.mxu0 0.0
        %1387 = vmatpush1.msra.mxu0 %v1351
        %1388 = vmatprep.subr.mxu0 0.0
        %1389 = vmatpush1.msra.mxu0 %v1350
        %1390 = vmatprep.subr.mxu0 0.0
        %1391 = vmatpush1.msra.mxu0 %v1349
        %1392 = vmatprep.subr.mxu0 0.0
        %1393 = vmatpush1.msra.mxu0 %v1348
        %1394 = vmatprep.subr.mxu0 0.0
        %1395 = vmatpush2.msra.mxu0 0.0
        %1396 = vmatprep.subr.mxu0 0.0
        %1397 = vmatpush2.msra.mxu0 0.0
        %1398 = vmatprep.subr.mxu0 0.0
        %1399 = vmatpush2.msra.mxu0 0.0
        %1400 = vmatprep.subr.mxu0 0.0
        %1401 = vmatpush2.msra.mxu0 0.0
        %1402 = vmatprep.subr.mxu0 0.0
        %1403 = vmatpush2.msra.mxu0 0.0
        %1404 = vmatprep.subr.mxu0 0.0
        %1405 = vmatpush2.msra.mxu0 0.0
        %1406 = vmatprep.subr.mxu0 0.0
        %1407 = vmatpush2.msra.mxu0 0.0
        %1408 = vmatprep.subr.mxu0 0.0
        %1409 = vmatpush2.msra.mxu0 0.0
        %1410 = vmatprep.subr.mxu0 0.0
        %1411 = vmatpush2.msra.mxu0 0.0
        %1412 = vmatprep.subr.mxu0 0.0
        %1413 = vmatpush2.msra.mxu0 0.0
        %1414 = vmatprep.subr.mxu0 0.0
        %1415 = vmatpush2.msra.mxu0 0.0
        %1416 = vmatprep.subr.mxu0 0.0
        %1417 = vmatpush2.msra.mxu0 0.0
        %1418 = vmatprep.subr.mxu0 0.0
        %1419 = vmatpush2.msra.mxu0 0.0
        %1420 = vmatprep.subr.mxu0 0.0
        %1421 = vmatpush2.msra.mxu0 0.0
        %1422 = vmatprep.subr.mxu0 0.0
        %1423 = vmatpush2.msra.mxu0 0.0
        %1424 = vmatprep.subr.mxu0 0.0
        %1425 = vmatpush2.msra.mxu0 0.0
        %1426 = vmatprep.mubr.f32.mxu0 0.0
        %1427 = vmatmul.mubr.f32.gmra.mxu0 %v1360
        %v1428 = vpop.f32.mrf.mxu0
        %v1429 = vadd.f32 %v1357, %v1428
        %v1430 = vpop.f32.mrf.mxu0
        %1431 = vdwg.mxu0
        %vm1432 = vcmp.gt.f32.partialorder %v1429, 0.0
        %v1433 = vmul.f32 %v1429, 0.01
        %v1434 = vsel %vm1432, %v1429, %v1433
        %v1435 = vld [vmem:[#allocation5] sm:$0x1]
        %v1436 = vld [vmem:[#allocation5 + $0x1] sm:$0x1]
        %v1437 = vld [vmem:[#allocation5 + $0x2] sm:$0x1]
        %v1438 = vld [vmem:[#allocation5 + $0x3] sm:$0x1]
        %v1439 = vld [vmem:[#allocation5 + $0x4] sm:$0x1]
        %v1440 = vld [vmem:[#allocation5 + $0x5] sm:$0x1]
        %v1441 = vld [vmem:[#allocation5 + $0x6] sm:$0x1]
        %v1442 = vld [vmem:[#allocation5 + $0x7] sm:$0x1]
        %v1443 = vld [vmem:[#allocation5 + $0x8] sm:$0x1]
        %1445 = vrot.lane.b32.xlu0 %v1436, 8
        %v1446 = vpop.permute.xlu0 %1445
        %1449 = vrot.lane.b32.xlu0 %v1437, 16
        %v1450 = vpop.permute.xlu0 %1449
        %1453 = vrot.lane.b32.xlu0 %v1438, 24
        %v1454 = vpop.permute.xlu0 %1453
        %1457 = vrot.lane.b32.xlu0 %v1439, 32
        %v1458 = vpop.permute.xlu0 %1457
        %1461 = vrot.lane.b32.xlu0 %v1440, 40
        %v1462 = vpop.permute.xlu0 %1461
        %1465 = vrot.lane.b32.xlu0 %v1441, 48
        %v1466 = vpop.permute.xlu0 %1465
        %1469 = vrot.lane.b32.xlu0 %v1442, 56
        %v1470 = vpop.permute.xlu0 %1469
        %1473 = vrot.lane.b32.xlu0 %v1443, 64
        %v1474 = vpop.permute.xlu0 %1473
        %v1476 = vsel %vm611, %v1435, %v1446
        %v1477 = vsel %vm883, %v1476, %v1450
        %v1478 = vsel %vm889, %v1477, %v1454
        %v1479 = vsel %vm895, %v1478, %v1458
        %v1480 = vsel %vm1340, %v1479, %v1462
        %v1481 = vsel %vm1342, %v1480, %v1466
        %v1482 = vsel %vm1344, %v1481, %v1470
        %v1483 = vsel %vm1346, %v1482, %v1474
        %v1484 = vld [vmem:[%s7] sm:$0xff]
        %v1485 = vld [vmem:[%s7 + $0x8] sm:$0xff]
        %v1486 = vld [vmem:[%s7 + $0x10] sm:$0xff]
        %v1487 = vld [vmem:[%s7 + $0x18] sm:$0xff]
        %v1488 = vld [vmem:[%s7 + $0x20] sm:$0xff]
        %v1489 = vld [vmem:[%s7 + $0x28] sm:$0xff]
        %v1490 = vld [vmem:[%s7 + $0x30] sm:$0xff]
        %v1491 = vld [vmem:[%s7 + $0x38] sm:$0xff]
        %v1492 = vld [vmem:[%s7 + $0x40] sm:$0xff]
        %v1493 = vld [vmem:[%s8] sm:$0x1]
        %v1495 = vsel %vm1358, %v1483, 0
        %1497 = vmatprep.subr.mxu0 0.0
        %1498 = vmatpush1.msra.mxu0 0.0
        %1499 = vmatprep.subr.mxu0 0.0
        %1500 = vmatpush1.msra.mxu0 0.0
        %1501 = vmatprep.subr.mxu0 0.0
        %1502 = vmatpush1.msra.mxu0 0.0
        %1503 = vmatprep.subr.mxu0 0.0
        %1504 = vmatpush1.msra.mxu0 0.0
        %1505 = vmatprep.subr.mxu0 0.0
        %1506 = vmatpush1.msra.mxu0 0.0
        %1507 = vmatprep.subr.mxu0 0.0
        %1508 = vmatpush1.msra.mxu0 0.0
        %1509 = vmatprep.subr.mxu0 0.0
        %1510 = vmatpush1.msra.mxu0 0.0
        %1511 = vmatprep.subr.mxu0 0.0
        %1512 = vmatpush1.msra.mxu0 %v1492
        %1513 = vmatprep.subr.mxu0 0.0
        %1514 = vmatpush1.msra.mxu0 %v1491
        %1515 = vmatprep.subr.mxu0 0.0
        %1516 = vmatpush1.msra.mxu0 %v1490
        %1517 = vmatprep.subr.mxu0 0.0
        %1518 = vmatpush1.msra.mxu0 %v1489
        %1519 = vmatprep.subr.mxu0 0.0
        %1520 = vmatpush1.msra.mxu0 %v1488
        %1521 = vmatprep.subr.mxu0 0.0
        %1522 = vmatpush1.msra.mxu0 %v1487
        %1523 = vmatprep.subr.mxu0 0.0
        %1524 = vmatpush1.msra.mxu0 %v1486
        %1525 = vmatprep.subr.mxu0 0.0
        %1526 = vmatpush1.msra.mxu0 %v1485
        %1527 = vmatprep.subr.mxu0 0.0
        %1528 = vmatpush1.msra.mxu0 %v1484
        %1529 = vmatprep.subr.mxu0 0.0
        %1530 = vmatpush2.msra.mxu0 0.0
        %1531 = vmatprep.subr.mxu0 0.0
        %1532 = vmatpush2.msra.mxu0 0.0
        %1533 = vmatprep.subr.mxu0 0.0
        %1534 = vmatpush2.msra.mxu0 0.0
        %1535 = vmatprep.subr.mxu0 0.0
        %1536 = vmatpush2.msra.mxu0 0.0
        %1537 = vmatprep.subr.mxu0 0.0
        %1538 = vmatpush2.msra.mxu0 0.0
        %1539 = vmatprep.subr.mxu0 0.0
        %1540 = vmatpush2.msra.mxu0 0.0
        %1541 = vmatprep.subr.mxu0 0.0
        %1542 = vmatpush2.msra.mxu0 0.0
        %1543 = vmatprep.subr.mxu0 0.0
        %1544 = vmatpush2.msra.mxu0 0.0
        %1545 = vmatprep.subr.mxu0 0.0
        %1546 = vmatpush2.msra.mxu0 0.0
        %1547 = vmatprep.subr.mxu0 0.0
        %1548 = vmatpush2.msra.mxu0 0.0
        %1549 = vmatprep.subr.mxu0 0.0
        %1550 = vmatpush2.msra.mxu0 0.0
        %1551 = vmatprep.subr.mxu0 0.0
        %1552 = vmatpush2.msra.mxu0 0.0
        %1553 = vmatprep.subr.mxu0 0.0
        %1554 = vmatpush2.msra.mxu0 0.0
        %1555 = vmatprep.subr.mxu0 0.0
        %1556 = vmatpush2.msra.mxu0 0.0
        %1557 = vmatprep.subr.mxu0 0.0
        %1558 = vmatpush2.msra.mxu0 0.0
        %1559 = vmatprep.subr.mxu0 0.0
        %1560 = vmatpush2.msra.mxu0 0.0
        %1561 = vmatprep.mubr.f32.mxu0 0.0
        %1562 = vmatmul.mubr.f32.gmra.mxu0 %v1495
        %v1563 = vpop.f32.mrf.mxu0
        %v1564 = vadd.f32 %v1493, %v1563
        %v1565 = vpop.f32.mrf.mxu0
        %1566 = vdwg.mxu0
        %vm1567 = vcmp.gt.f32.partialorder %v1564, 0.0
        %v1568 = vmul.f32 %v1564, 0.01
        %v1569 = vsel %vm1567, %v1564, %v1568
        %1571 = vrot.lane.b32.xlu0 %v1569, 16
        %v1572 = vpop.permute.xlu0 %1571
        %v1574 = vsel %vm883, %v1434, %v1572
        %v1575 = vld [vmem:[%s9] sm:$0xff]
        %v1576 = vld [vmem:[%s9 + $0x8] sm:$0xff]
        %v1577 = vld [vmem:[%s9 + $0x10] sm:$0xff]
        %v1578 = vld [vmem:[%s9 + $0x18] sm:$0xff]
        %v1579 = vld [vmem:[%s10] sm:$0x1]
        %v1581 = vsel %vm895, %v1574, 0
        %1583 = vmatprep.subr.mxu0 0.0
        %1584 = vmatpush1.msra.mxu0 0.0
        %1585 = vmatprep.subr.mxu0 0.0
        %1586 = vmatpush1.msra.mxu0 0.0
        %1587 = vmatprep.subr.mxu0 0.0
        %1588 = vmatpush1.msra.mxu0 0.0
        %1589 = vmatprep.subr.mxu0 0.0
        %1590 = vmatpush1.msra.mxu0 0.0
        %1591 = vmatprep.subr.mxu0 0.0
        %1592 = vmatpush1.msra.mxu0 0.0
        %1593 = vmatprep.subr.mxu0 0.0
        %1594 = vmatpush1.msra.mxu0 0.0
        %1595 = vmatprep.subr.mxu0 0.0
        %1596 = vmatpush1.msra.mxu0 0.0
        %1597 = vmatprep.subr.mxu0 0.0
        %1598 = vmatpush1.msra.mxu0 0.0
        %1599 = vmatprep.subr.mxu0 0.0
        %1600 = vmatpush1.msra.mxu0 0.0
        %1601 = vmatprep.subr.mxu0 0.0
        %1602 = vmatpush1.msra.mxu0 0.0
        %1603 = vmatprep.subr.mxu0 0.0
        %1604 = vmatpush1.msra.mxu0 0.0
        %1605 = vmatprep.subr.mxu0 0.0
        %1606 = vmatpush1.msra.mxu0 0.0
        %1607 = vmatprep.subr.mxu0 0.0
        %1608 = vmatpush1.msra.mxu0 %v1578
        %1609 = vmatprep.subr.mxu0 0.0
        %1610 = vmatpush1.msra.mxu0 %v1577
        %1611 = vmatprep.subr.mxu0 0.0
        %1612 = vmatpush1.msra.mxu0 %v1576
        %1613 = vmatprep.subr.mxu0 0.0
        %1614 = vmatpush1.msra.mxu0 %v1575
        %1615 = vmatprep.subr.mxu0 0.0
        %1616 = vmatpush2.msra.mxu0 0.0
        %1617 = vmatprep.subr.mxu0 0.0
        %1618 = vmatpush2.msra.mxu0 0.0
        %1619 = vmatprep.subr.mxu0 0.0
        %1620 = vmatpush2.msra.mxu0 0.0
        %1621 = vmatprep.subr.mxu0 0.0
        %1622 = vmatpush2.msra.mxu0 0.0
        %1623 = vmatprep.subr.mxu0 0.0
        %1624 = vmatpush2.msra.mxu0 0.0
        %1625 = vmatprep.subr.mxu0 0.0
        %1626 = vmatpush2.msra.mxu0 0.0
        %1627 = vmatprep.subr.mxu0 0.0
        %1628 = vmatpush2.msra.mxu0 0.0
        %1629 = vmatprep.subr.mxu0 0.0
        %1630 = vmatpush2.msra.mxu0 0.0
        %1631 = vmatprep.subr.mxu0 0.0
        %1632 = vmatpush2.msra.mxu0 0.0
        %1633 = vmatprep.subr.mxu0 0.0
        %1634 = vmatpush2.msra.mxu0 0.0
        %1635 = vmatprep.subr.mxu0 0.0
        %1636 = vmatpush2.msra.mxu0 0.0
        %1637 = vmatprep.subr.mxu0 0.0
        %1638 = vmatpush2.msra.mxu0 0.0
        %1639 = vmatprep.subr.mxu0 0.0
        %1640 = vmatpush2.msra.mxu0 0.0
        %1641 = vmatprep.subr.mxu0 0.0
        %1642 = vmatpush2.msra.mxu0 0.0
        %1643 = vmatprep.subr.mxu0 0.0
        %1644 = vmatpush2.msra.mxu0 0.0
        %1645 = vmatprep.subr.mxu0 0.0
        %1646 = vmatpush2.msra.mxu0 0.0
        %1647 = vmatprep.mubr.f32.mxu0 0.0
        %1648 = vmatmul.mubr.f32.gmra.mxu0 %v1581
        %v1649 = vpop.f32.mrf.mxu0
        %v1650 = vadd.f32 %v1579, %v1649
        %v1651 = vpop.f32.mrf.mxu0
        %1652 = vdwg.mxu0
        %vm1653 = vcmp.gt.f32.partialorder %v1650, 0.0
        %v1654 = vmul.f32 %v1650, 0.01
        %v1655 = vsel %vm1653, %v1650, %v1654
        %v1656 = vld [vmem:[%s11] sm:$0xff]
        %v1657 = vld [vmem:[%s11 + $0x8] sm:$0xff]
        %v1658 = vld [vmem:[%s11 + $0x10] sm:$0xff]
        %v1659 = vld [vmem:[%s11 + $0x18] sm:$0xff]
        %v1660 = vld [vmem:[%s12] sm:$0x1]
        %v1662 = vsel %vm895, %v1655, 0
        %1664 = vmatprep.subr.mxu0 0.0
        %1665 = vmatpush1.msra.mxu0 0.0
        %1666 = vmatprep.subr.mxu0 0.0
        %1667 = vmatpush1.msra.mxu0 0.0
        %1668 = vmatprep.subr.mxu0 0.0
        %1669 = vmatpush1.msra.mxu0 0.0
        %1670 = vmatprep.subr.mxu0 0.0
        %1671 = vmatpush1.msra.mxu0 0.0
        %1672 = vmatprep.subr.mxu0 0.0
        %1673 = vmatpush1.msra.mxu0 0.0
        %1674 = vmatprep.subr.mxu0 0.0
        %1675 = vmatpush1.msra.mxu0 0.0
        %1676 = vmatprep.subr.mxu0 0.0
        %1677 = vmatpush1.msra.mxu0 0.0
        %1678 = vmatprep.subr.mxu0 0.0
        %1679 = vmatpush1.msra.mxu0 0.0
        %1680 = vmatprep.subr.mxu0 0.0
        %1681 = vmatpush1.msra.mxu0 0.0
        %1682 = vmatprep.subr.mxu0 0.0
        %1683 = vmatpush1.msra.mxu0 0.0
        %1684 = vmatprep.subr.mxu0 0.0
        %1685 = vmatpush1.msra.mxu0 0.0
        %1686 = vmatprep.subr.mxu0 0.0
        %1687 = vmatpush1.msra.mxu0 0.0
        %1688 = vmatprep.subr.mxu0 0.0
        %1689 = vmatpush1.msra.mxu0 %v1659
        %1690 = vmatprep.subr.mxu0 0.0
        %1691 = vmatpush1.msra.mxu0 %v1658
        %1692 = vmatprep.subr.mxu0 0.0
        %1693 = vmatpush1.msra.mxu0 %v1657
        %1694 = vmatprep.subr.mxu0 0.0
        %1695 = vmatpush1.msra.mxu0 %v1656
        %1696 = vmatprep.subr.mxu0 0.0
        %1697 = vmatpush2.msra.mxu0 0.0
        %1698 = vmatprep.subr.mxu0 0.0
        %1699 = vmatpush2.msra.mxu0 0.0
        %1700 = vmatprep.subr.mxu0 0.0
        %1701 = vmatpush2.msra.mxu0 0.0
        %1702 = vmatprep.subr.mxu0 0.0
        %1703 = vmatpush2.msra.mxu0 0.0
        %1704 = vmatprep.subr.mxu0 0.0
        %1705 = vmatpush2.msra.mxu0 0.0
        %1706 = vmatprep.subr.mxu0 0.0
        %1707 = vmatpush2.msra.mxu0 0.0
        %1708 = vmatprep.subr.mxu0 0.0
        %1709 = vmatpush2.msra.mxu0 0.0
        %1710 = vmatprep.subr.mxu0 0.0
        %1711 = vmatpush2.msra.mxu0 0.0
        %1712 = vmatprep.subr.mxu0 0.0
        %1713 = vmatpush2.msra.mxu0 0.0
        %1714 = vmatprep.subr.mxu0 0.0
        %1715 = vmatpush2.msra.mxu0 0.0
        %1716 = vmatprep.subr.mxu0 0.0
        %1717 = vmatpush2.msra.mxu0 0.0
        %1718 = vmatprep.subr.mxu0 0.0
        %1719 = vmatpush2.msra.mxu0 0.0
        %1720 = vmatprep.subr.mxu0 0.0
        %1721 = vmatpush2.msra.mxu0 0.0
        %1722 = vmatprep.subr.mxu0 0.0
        %1723 = vmatpush2.msra.mxu0 0.0
        %1724 = vmatprep.subr.mxu0 0.0
        %1725 = vmatpush2.msra.mxu0 0.0
        %1726 = vmatprep.subr.mxu0 0.0
        %1727 = vmatpush2.msra.mxu0 0.0
        %1728 = vmatprep.mubr.f32.mxu0 0.0
        %1729 = vmatmul.mubr.f32.gmra.mxu0 %v1662
        %v1730 = vpop.f32.mrf.mxu0
        %v1731 = vadd.f32 %v1660, %v1730
        %v1732 = vpop.f32.mrf.mxu0
        %1733 = vdwg.mxu0
        %vm1734 = vcmp.gt.f32.partialorder %v1731, 0.0
        %v1735 = vmul.f32 %v1731, 0.01
        %v1736 = vsel %vm1734, %v1731, %v1735
        %vm1737 = vcmask 32768
        %1738 = vst.msk [vmem:[%s597] sm:$0x1] %vm1737, %v1736
        %s1739 = sand.u32 %s313, 1
        %s1740 = scalar_lea.sflag [#allocation8], %s1739
        %s1741 = sand.u32 %s313, 1
        %s1742 = scalar_lea.vmem [#allocation7], %s1741
        // Predicated region
        $region111: #{_lambda_.1} parent=105 // pred_check
          %p1743 = pneg %p323
        $region112: #{_lambda_.1} parent=105 // pred_check_branch
          %1745 = sbr.rel (%p1743) target = $region114
        $region113: #{_lambda_.1} parent=105 // pred_region
          %s1747 = ssub.s32 16, 16
          %1748 = vsyncadd %s1740, %s1747
          %s1749 = smul.addr %s27, 16
          %s1750 = scalar_lea.hbm %s13, %s1749
          %s1752 = sshll.u32 %s1742, 4
          %s1753 = int_to_ptr.vmem [resolvable:$true] %s1752
          %1755 = dma.vmem_to_hbm [thread:$0]  %s1753, 16, %s1750, %s1740
        $region114: #{_lambda_.1} parent=105 // pred_fallthru
          _
      $region106: #{_lambda_.1} parent=5 // pred_fallthru
        _
      %p1756 = scmp.le.s32.totalorder 2, %s22
      // Predicated region
      $region115: #{_lambda_.1} parent=5 // pred_check
        %p1757 = pneg %p1756
      $region116: #{_lambda_.1} parent=5 // pred_check_branch
        %1759 = sbr.rel (%p1757) target = $region118
      $region117: #{_lambda_.1} parent=5 // pred_region
        %s1760 = ssub.s32 %s22, 2
        // Predicated region
        $region119: #{_lambda_.1} parent=117 // pred_check
          %p1761 = pneg %p329
        $region120: #{_lambda_.1} parent=117 // pred_check_branch
          %1763 = sbr.rel (%p1761) target = $region122
        $region121: #{_lambda_.1} parent=117 // pred_region
          %s1764 = sand.u32 %s314, 1
          %s1765 = scalar_lea.sflag [#allocation8], %s1764
          %s1766 = sand.u32 %s314, 1
          %s1767 = scalar_lea.vmem [#allocation7], %s1766
          %1768 = dma.done %s1765, 16
        $region122: #{_lambda_.1} parent=117 // pred_fallthru
          _
      $region118: #{_lambda_.1} parent=5 // pred_fallthru
        _
    $region6: #{_lambda_.1} parent=1 // loop_footer
      %s26 = sadd.s32 1, %s22
    $region7: #{_lambda_.1} parent=1 // loop_footer_branch
      %21 = sbr.rel target = $region3
    $region8: #{_lambda_.1} parent=1 // loop_exit
      _
    %1769 = vsyncpa [#allocation8], 1
    %s1770 = scalar_lea.sflag [#allocation8], 1
    %1771 = vsyncpa %s1770, 1

</llo_original>
